<compile_context>
chip_gen: v7x
topology: tpu7x:2x2x1
jax: 0.10.0
libtpu: 0.0.40
codegen_flags: <defaults>
</compile_context>

<pallas_src>
import functools

import jax
import jax.numpy as jnp
from jax import lax
from jax.experimental import pallas as pl
from jax.experimental.pallas import tpu as pltpu


def _up_double_conv_kernel(x2g_ref, xlo_ref, xhi_ref, frac_ref, mask_ref,
                           w1_ref, g1_ref, b1_ref, w2_ref, g2_ref, b2_ref,
                           y_ref, xcat_ref,
                           pad1_ref, pad2_ref, acc1_ref,
                           *, K, LEAD, Wacc, inv_count):
    """Single-program, all-resident kernel.

    Gapped lane layout: column LEAD + n*SEG + l holds (batch n, position l) for
    l in [0, L2); the remaining SEG - L2 >= 4 columns of each segment plus the
    128-lane lead/trail strips are zero, so the 9-tap conv windows of one batch
    never see another batch's data, and every interior store is 128-aligned.
      x2g/xlo/xhi : (C, Wacc)       f32   gapped, zeros in gaps (Wacc = N*SEG)
      frac/mask   : (1, Wacc)       f32   lerp fraction / interior-column mask
      w1/w2       : (K, Cout, Cin)  bf16  w[k] = torch_weight[:, :, k]
      g*/b*       : (C, 1)          f32
      y/xcat      : (C, Wacc)       f32   gapped outputs (wrapper slices interiors)
      pad1/pad2   : (C, LEAD+Wacc+TRAIL) bf16  padded conv inputs
      acc1        : (Cmid, Wacc)    f32   conv-1 accumulator
    """
    P = (K - 1) // 2
    eps = 1e-5
    Cin = pad1_ref.shape[0]
    Cmid = pad2_ref.shape[0]
    TRAIL = pad1_ref.shape[1] - LEAD - Wacc

    mask = mask_ref[...]                                     # (1, Wacc)

    def bn_relu(acc, g_ref, b_ref):
        # Training-mode BatchNorm1d (biased variance) over the N*L2 interior cols.
        s1 = jnp.sum(acc * mask, axis=1, keepdims=True) * inv_count
        s2 = jnp.sum(acc * acc * mask, axis=1, keepdims=True) * inv_count
        var = s2 - s1 * s1
        scale = lax.rsqrt(var + eps) * g_ref[...]
        return jnp.maximum((acc - s1) * scale + b_ref[...], 0.0)

    def conv_taps(acc_ref_, w_ref_, src_ref_):
        # acc[:, m] = sum_k w_k @ src[:, LEAD + m - P + k]; one bf16 MXU matmul
        # per tap, f32 accumulation in VMEM (K is small, fixed and static).
        for k in range(K):
            win = src_ref_[:, LEAD - P + k:LEAD - P + k + Wacc]
            prod = jnp.dot(w_ref_[k], win, preferred_element_type=jnp.float32)
            if k == 0:
                acc_ref_[...] = prod
            else:
                acc_ref_[...] += prod

    # ---- 1) upsample (align_corners linear lerp on the VPU) + channel concat ----
    fr = frac_ref[...]
    x1up = xlo_ref[...] * (1.0 - fr) + xhi_ref[...] * fr      # (C1, Wacc) f32
    xcat = jnp.concatenate([x2g_ref[...], x1up], axis=0)      # (Cin, Wacc) f32
    xcat_ref[...] = xcat                                      # one wide f32 store

    # ---- 2) padded bf16 conv-1 input: interior gaps arrive already zeroed, so
    #         only the 128-lane lead/trail halo strips need zeroing ----
    pad1_ref[:, :LEAD] = jnp.zeros((Cin, LEAD), pad1_ref.dtype)
    pad1_ref[:, LEAD + Wacc:] = jnp.zeros((Cin, TRAIL), pad1_ref.dtype)
    pad1_ref[:, LEAD:LEAD + Wacc] = xcat.astype(pad1_ref.dtype)

    # ---- 3) Conv1d #1: K-tap MXU accumulation into the f32 scratch ----
    conv_taps(acc1_ref, w1_ref, pad1_ref)

    # ---- 4) BN1 + ReLU, masked and written straight into the padded conv-2
    #         input (no h1 intermediate copy) ----
    pad2_ref[:, :LEAD] = jnp.zeros((Cmid, LEAD), pad2_ref.dtype)
    pad2_ref[:, LEAD + Wacc:] = jnp.zeros((Cmid, TRAIL), pad2_ref.dtype)
    h1 = bn_relu(acc1_ref[...], g1_ref, b1_ref)
    pad2_ref[:, LEAD:LEAD + Wacc] = (h1 * mask).astype(pad2_ref.dtype)

    # ---- 5) Conv1d #2 accumulated into the f32 output ref, BN2 + ReLU in place
    #         (gap columns hold don't-care values; wrapper slices interiors) ----
    conv_taps(y_ref, w2_ref, pad2_ref)
    y_ref[...] = bn_relu(y_ref[...], g2_ref, b2_ref)


def up_forward(x1, x2, w1, g1, b1, w2, g2, b2):
    """x1: (N, C1, L1), x2: (N, C2, L2); conv weights in PyTorch (Cout, Cin, K)."""
    N, C1, L1 = x1.shape
    _, C2, L2 = x2.shape
    Cin = C1 + C2
    Cmid, Cin_w, K = w1.shape
    assert Cin_w == Cin
    Cout = w2.shape[0]
    P = (K - 1) // 2

    # Gapped lane layout: per-batch segment SEG (multiple of 128, >= L2 + P) plus
    # a single shared 128-lane lead halo; interiors start on 128-lane boundaries.
    LEAD = TRAIL = 128
    SEG = ((L2 + P + 127) // 128) * 128
    Wacc = N * SEG
    Wbuf = LEAD + Wacc + TRAIL

    # --- trace-time upsample indices (scale 4, mode='linear', align_corners=True) ---
    scale = 4
    L_up = scale * L1
    diff = L2 - L_up
    pad_left = diff // 2
    out_idx = jnp.arange(L_up, dtype=jnp.float32)
    if L1 > 1 and L_up > 1:
        src = out_idx * (L1 - 1) / (L_up - 1)
    else:
        src = jnp.zeros((L_up,), jnp.float32)
    lo = jnp.clip(jnp.floor(src).astype(jnp.int32), 0, L1 - 1)
    hi = jnp.minimum(lo + 1, L1 - 1)
    frac = src - lo.astype(jnp.float32)

    # Static-index tap gather + F.pad placement (layout plumbing; the lerp itself
    # runs in-kernel on the VPU).
    x_lo = jnp.zeros((N, C1, L2), jnp.float32).at[:, :, pad_left:pad_left + L_up].set(x1[:, :, lo])
    x_hi = jnp.zeros((N, C1, L2), jnp.float32).at[:, :, pad_left:pad_left + L_up].set(x1[:, :, hi])
    frac_full = jnp.zeros((L2,), jnp.float32).at[pad_left:pad_left + L_up].set(frac)

    def gapped(a_ncl):               # (N, C, L2) -> (C, N*SEG) with zero gaps
        a = jnp.transpose(a_ncl, (1, 0, 2))
        a = jnp.pad(a, ((0, 0), (0, 0), (0, SEG - L2)))
        return a.reshape(a.shape[0], Wacc)

    x2_g = gapped(x2)
    xlo_g = gapped(x_lo)
    xhi_g = gapped(x_hi)
    frac_g = jnp.tile(jnp.pad(frac_full, (0, SEG - L2)), N).reshape(1, Wacc)
    mask_g = jnp.tile(jnp.pad(jnp.ones((L2,), jnp.float32), (0, SEG - L2)), N).reshape(1, Wacc)

    # Per-tap weight slabs, bf16 for the MXU (f32 accumulation happens in-kernel).
    w1t = jnp.transpose(w1, (2, 0, 1)).astype(jnp.bfloat16)   # (K, Cmid, Cin)
    w2t = jnp.transpose(w2, (2, 0, 1)).astype(jnp.bfloat16)   # (K, Cout, Cmid)

    kernel = functools.partial(_up_double_conv_kernel, K=K, LEAD=LEAD, Wacc=Wacc,
                               inv_count=1.0 / float(N * L2))

    # VMEM budget (all-resident, gridless): inputs + outputs + scratch, with headroom.
    resident = (4 * (C2 + 2 * C1 + 2) * Wacc             # gapped f32 inputs
                + 2 * K * (Cmid * Cin + Cout * Cmid)      # bf16 weight slabs
                + 4 * 2 * (Cmid + Cout)                   # gammas / betas
                + 4 * (Cout + Cin) * Wacc                 # f32 outputs
                + 2 * (Cin + Cmid) * Wbuf                 # bf16 padded scratches
                + 4 * Cmid * Wacc)                        # f32 conv-1 accumulator
    vmem_limit = int(min(64 << 20, max(8 << 20, 4 * resident)))

    y_g, xcat_g = pl.pallas_call(
        kernel,
        out_shape=(jax.ShapeDtypeStruct((Cout, Wacc), jnp.float32),
                   jax.ShapeDtypeStruct((Cin, Wacc), jnp.float32)),
        in_specs=[pl.BlockSpec(memory_space=pltpu.MemorySpace.VMEM)] * 11,
        out_specs=(pl.BlockSpec(memory_space=pltpu.MemorySpace.VMEM),
                   pl.BlockSpec(memory_space=pltpu.MemorySpace.VMEM)),
        scratch_shapes=[pltpu.VMEM((Cin, Wbuf), jnp.bfloat16),
                        pltpu.VMEM((Cmid, Wbuf), jnp.bfloat16),
                        pltpu.VMEM((Cmid, Wacc), jnp.float32)],
        compiler_params=pltpu.CompilerParams(vmem_limit_bytes=vmem_limit),
    )(x2_g, xlo_g, xhi_g, frac_g, mask_g,
      w1t, g1.reshape(Cmid, 1), b1.reshape(Cmid, 1),
      w2t, g2.reshape(Cout, 1), b2.reshape(Cout, 1))

    # Slice interiors out of the gapped slabs; back to PyTorch NCL layout.
    y = jnp.transpose(y_g.reshape(Cout, N, SEG)[:, :, :L2], (1, 0, 2))
    xcat = jnp.transpose(xcat_g.reshape(Cin, N, SEG)[:, :, :L2], (1, 0, 2))
    return y, xcat


# --------------------------- pure-JAX reference ---------------------------
def ref_forward(x1, x2, w1, g1, b1, w2, g2, b2, conv_inputs_bf16=False):
    N, C1, L1 = x1.shape
    _, C2, L2 = x2.shape
    L_up = 4 * L1
    out_idx = jnp.arange(L_up, dtype=jnp.float32)
    src = out_idx * (L1 - 1) / (L_up - 1) if L1 > 1 else jnp.zeros((L_up,), jnp.float32)
    lo = jnp.floor(src).astype(jnp.int32)
    hi = jnp.minimum(lo + 1, L1 - 1)
    frac = src - lo.astype(jnp.float32)
    x1u = x1[:, :, lo] * (1.0 - frac) + x1[:, :, hi] * frac
    diff = L2 - L_up
    x1u = jnp.pad(x1u, ((0, 0), (0, 0), (diff // 2, diff - diff // 2)))
    x = jnp.concatenate([x2, x1u], axis=1)

    def q(a):
        return a.astype(jnp.bfloat16).astype(jnp.float32) if conv_inputs_bf16 else a

    def block(h, w, g, b):
        y = lax.conv_general_dilated(q(h), q(w), window_strides=(1,), padding=[(4, 4)],
                                     dimension_numbers=('NCH', 'OIH', 'NCH'))
        m = y.mean(axis=(0, 2), keepdims=True)
        v = ((y - m) ** 2).mean(axis=(0, 2), keepdims=True)
        y = (y - m) * lax.rsqrt(v + 1e-5) * g.reshape(1, -1, 1) + b.reshape(1, -1, 1)
        return jnp.maximum(y, 0.0)

    y = block(x, w1, g1, b1)
    y = block(y, w2, g2, b2)
    return y, x


if __name__ == "__main__":
    # NOTE: correctness-only shapes; do not tune performance at this size.
    key = jax.random.PRNGKey(0)
    k1, k2, k3, k4 = jax.random.split(key, 4)

    # Up(in_channels=8, out_channels=4, bilinear=True)
    N = 2
    in_channels, out_channels = 8, 4
    mid_channels = in_channels // 2          # DoubleConv mid channels = 4
    C1 = in_channels // 2                    # x1 (deep-path) channels
    C2 = in_channels - C1                    # x2 (skip) channels
    L1 = 4                                   # x1 length -> upsampled to 16
    L2 = 18                                  # x2 length -> diff = 2, pad (1, 1)
    K = 9

    x1 = jax.random.normal(k1, (N, C1, L1), jnp.float32)
    x2 = jax.random.normal(k2, (N, C2, L2), jnp.float32)

    # Conv weights in PyTorch layout (Cout, Cin, K), bias=False.
    # BatchNorm init: weight=1, bias=0 (fresh module, training-mode batch stats).
    w1 = jax.random.normal(k3, (mid_channels, in_channels, K), jnp.float32) * 0.1
    w2 = jax.random.normal(k4, (out_channels, mid_channels, K), jnp.float32) * 0.1
    g1 = jnp.ones((mid_channels,), jnp.float32)
    b1 = jnp.zeros((mid_channels,), jnp.float32)
    g2 = jnp.ones((out_channels,), jnp.float32)
    b2 = jnp.zeros((out_channels,), jnp.float32)

    y, xcat = up_forward(x1, x2, w1, g1, b1, w2, g2, b2)
    jax.block_until_ready((y, xcat))

    assert y.shape == (N, out_channels, L2) and xcat.shape == (N, in_channels, L2)

    # xcat (the module's second output) is computed in pure f32 end-to-end.
    y_f32, x_f32 = ref_forward(x1, x2, w1, g1, b1, w2, g2, b2, conv_inputs_bf16=False)
    assert jnp.allclose(xcat, x_f32, atol=1e-5, rtol=1e-5), "concat/upsample mismatch"

    # y uses bf16 MXU inputs (f32 accumulation): compare tightly against a
    # reference with the same bf16 input rounding, and loosely against pure f32.
    y_bf16, _ = ref_forward(x1, x2, w1, g1, b1, w2, g2, b2, conv_inputs_bf16=True)
    assert jnp.allclose(y, y_bf16, atol=2e-3, rtol=2e-3), "double-conv mismatch (bf16 ref)"
    assert jnp.allclose(y, y_f32, atol=5e-2, rtol=5e-2), "double-conv mismatch (f32 ref)"

    print("KERNEL_OK")
</pallas_src>

<mosaic_0001>
module attributes {stable_mosaic.version = 11 : i64} {
  func.func @_up_double_conv_kernel(%arg0: memref<4x256xf32, #tpu.memory_space<vmem>>, %arg1: memref<4x256xf32, #tpu.memory_space<vmem>>, %arg2: memref<4x256xf32, #tpu.memory_space<vmem>>, %arg3: memref<1x256xf32, #tpu.memory_space<vmem>>, %arg4: memref<1x256xf32, #tpu.memory_space<vmem>>, %arg5: memref<9x4x8xbf16, #tpu.memory_space<vmem>>, %arg6: memref<4x1xf32, #tpu.memory_space<vmem>>, %arg7: memref<4x1xf32, #tpu.memory_space<vmem>>, %arg8: memref<9x4x4xbf16, #tpu.memory_space<vmem>>, %arg9: memref<4x1xf32, #tpu.memory_space<vmem>>, %arg10: memref<4x1xf32, #tpu.memory_space<vmem>>, %arg11: memref<4x256xf32, #tpu.memory_space<vmem>>, %arg12: memref<8x256xf32, #tpu.memory_space<vmem>>, %arg13: memref<8x512xbf16, #tpu.memory_space<vmem>>, %arg14: memref<4x512xbf16, #tpu.memory_space<vmem>>, %arg15: memref<4x256xf32, #tpu.memory_space<vmem>>) attributes {dimension_semantics = [], scalar_prefetch = 0 : i64, scratch_operands = 3 : i64, tpu.core_type = #tpu.core_type<tc>} {
    %c0 = arith.constant 0 : index
    %c0_0 = arith.constant 0 : index
    %0 = vector.load %arg4[%c0, %c0_0] : memref<1x256xf32, #tpu.memory_space<vmem>>, vector<1x256xf32>
    %c0_1 = arith.constant 0 : index
    %c0_2 = arith.constant 0 : index
    %1 = vector.load %arg3[%c0_1, %c0_2] : memref<1x256xf32, #tpu.memory_space<vmem>>, vector<1x256xf32>
    %c0_3 = arith.constant 0 : index
    %c0_4 = arith.constant 0 : index
    %2 = vector.load %arg1[%c0_3, %c0_4] : memref<4x256xf32, #tpu.memory_space<vmem>>, vector<4x256xf32>
    %cst = arith.constant 1.000000e+00 : f32
    %3 = vector.broadcast %cst : f32 to vector<1x256xf32>
    %4 = arith.subf %3, %1 : vector<1x256xf32>
    %5 = vector.broadcast %4 : vector<1x256xf32> to vector<4x256xf32>
    %6 = arith.mulf %2, %5 : vector<4x256xf32>
    %c0_5 = arith.constant 0 : index
    %c0_6 = arith.constant 0 : index
    %7 = vector.load %arg2[%c0_5, %c0_6] : memref<4x256xf32, #tpu.memory_space<vmem>>, vector<4x256xf32>
    %8 = vector.broadcast %1 : vector<1x256xf32> to vector<4x256xf32>
    %9 = arith.mulf %7, %8 : vector<4x256xf32>
    %10 = arith.addf %6, %9 : vector<4x256xf32>
    %c0_7 = arith.constant 0 : index
    %c0_8 = arith.constant 0 : index
    %11 = vector.load %arg0[%c0_7, %c0_8] : memref<4x256xf32, #tpu.memory_space<vmem>>, vector<4x256xf32>
    %12 = tpu.concatenate %11, %10 in 0 : vector<4x256xf32>, vector<4x256xf32> -> vector<8x256xf32>
    %c0_9 = arith.constant 0 : index
    %c0_10 = arith.constant 0 : index
    %13 = vector.load %arg12[%c0_9, %c0_10] : memref<8x256xf32, #tpu.memory_space<vmem>>, vector<8x256xf32>
    tpu.vector_store %arg12[%c0_9, %c0_10], %12 {strides = array<i32>} : memref<8x256xf32, #tpu.memory_space<vmem>>, vector<8x256xf32>,
    %cst_11 = arith.constant 0.000000e+00 : bf16
    %14 = vector.broadcast %cst_11 : bf16 to vector<8x128xbf16>
    %c0_12 = arith.constant 0 : index
    %c0_13 = arith.constant 0 : index
    %15 = vector.load %arg13[%c0_12, %c0_13] : memref<8x512xbf16, #tpu.memory_space<vmem>>, vector<8x128xbf16>
    tpu.vector_store %arg13[%c0_12, %c0_13], %14 {strides = array<i32>} : memref<8x512xbf16, #tpu.memory_space<vmem>>, vector<8x128xbf16>,
    %cst_14 = arith.constant 0.000000e+00 : bf16
    %16 = vector.broadcast %cst_14 : bf16 to vector<8x128xbf16>
    %c0_15 = arith.constant 0 : index
    %c384 = arith.constant 384 : index
    %17 = vector.load %arg13[%c0_15, %c384] : memref<8x512xbf16, #tpu.memory_space<vmem>>, vector<8x128xbf16>
    tpu.vector_store %arg13[%c0_15, %c384], %16 {strides = array<i32>} : memref<8x512xbf16, #tpu.memory_space<vmem>>, vector<8x128xbf16>,
    %18 = arith.truncf %12 : vector<8x256xf32> to vector<8x256xbf16>
    %c0_16 = arith.constant 0 : index
    %c128 = arith.constant 128 : index
    %19 = vector.load %arg13[%c0_16, %c128] : memref<8x512xbf16, #tpu.memory_space<vmem>>, vector<8x256xbf16>
    tpu.vector_store %arg13[%c0_16, %c128], %18 {strides = array<i32>} : memref<8x512xbf16, #tpu.memory_space<vmem>>, vector<8x256xbf16>,
    %c0_17 = arith.constant 0 : index
    %c124 = arith.constant 124 : index
    %20 = vector.load %arg13[%c0_17, %c124] : memref<8x512xbf16, #tpu.memory_space<vmem>>, vector<8x256xbf16>
    %c0_18 = arith.constant 0 : index
    %c0_19 = arith.constant 0 : index
    %c0_20 = arith.constant 0 : index
    %21 = vector.load %arg5[%c0_18, %c0_19, %c0_20] : memref<9x4x8xbf16, #tpu.memory_space<vmem>>, vector<1x4x8xbf16>
    %22 = vector.shape_cast %21 : vector<1x4x8xbf16> to vector<4x8xbf16>
    %cst_21 = arith.constant dense<0.000000e+00> : vector<4x256xf32>
    %23 = tpu.matmul %22, %20, %cst_21 {dimension_numbers = #tpu.dot_dimension_numbers<[1], [0], [0], [1], [0, 0, 1, 1], [], []>} : vector<4x8xbf16>, vector<8x256xbf16>, vector<4x256xf32> -> vector<4x256xf32>
    %c0_22 = arith.constant 0 : index
    %c0_23 = arith.constant 0 : index
    %24 = vector.load %arg15[%c0_22, %c0_23] : memref<4x256xf32, #tpu.memory_space<vmem>>, vector<4x256xf32>
    tpu.vector_store %arg15[%c0_22, %c0_23], %23 {strides = array<i32>} : memref<4x256xf32, #tpu.memory_space<vmem>>, vector<4x256xf32>,
    %c0_24 = arith.constant 0 : index
    %c125 = arith.constant 125 : index
    %25 = vector.load %arg13[%c0_24, %c125] : memref<8x512xbf16, #tpu.memory_space<vmem>>, vector<8x256xbf16>
    %c1 = arith.constant 1 : index
    %c0_25 = arith.constant 0 : index
    %c0_26 = arith.constant 0 : index
    %26 = vector.load %arg5[%c1, %c0_25, %c0_26] : memref<9x4x8xbf16, #tpu.memory_space<vmem>>, vector<1x4x8xbf16>
    %27 = vector.shape_cast %26 : vector<1x4x8xbf16> to vector<4x8xbf16>
    %cst_27 = arith.constant dense<0.000000e+00> : vector<4x256xf32>
    %28 = tpu.matmul %27, %25, %cst_27 {dimension_numbers = #tpu.dot_dimension_numbers<[1], [0], [0], [1], [0, 0, 1, 1], [], []>} : vector<4x8xbf16>, vector<8x256xbf16>, vector<4x256xf32> -> vector<4x256xf32>
    %c0_28 = arith.constant 0 : index
    %c0_29 = arith.constant 0 : index
    %29 = vector.load %arg15[%c0_28, %c0_29] : memref<4x256xf32, #tpu.memory_space<vmem>>, vector<4x256xf32>
    %30 = arith.addf %29, %28 : vector<4x256xf32>
    %c0_30 = arith.constant 0 : index
    %c0_31 = arith.constant 0 : index
    %31 = vector.load %arg15[%c0_30, %c0_31] : memref<4x256xf32, #tpu.memory_space<vmem>>, vector<4x256xf32>
    tpu.vector_store %arg15[%c0_30, %c0_31], %30 {strides = array<i32>} : memref<4x256xf32, #tpu.memory_space<vmem>>, vector<4x256xf32>,
    %c0_32 = arith.constant 0 : index
    %c126 = arith.constant 126 : index
    %32 = vector.load %arg13[%c0_32, %c126] : memref<8x512xbf16, #tpu.memory_space<vmem>>, vector<8x256xbf16>
    %c2 = arith.constant 2 : index
    %c0_33 = arith.constant 0 : index
    %c0_34 = arith.constant 0 : index
    %33 = vector.load %arg5[%c2, %c0_33, %c0_34] : memref<9x4x8xbf16, #tpu.memory_space<vmem>>, vector<1x4x8xbf16>
    %34 = vector.shape_cast %33 : vector<1x4x8xbf16> to vector<4x8xbf16>
    %cst_35 = arith.constant dense<0.000000e+00> : vector<4x256xf32>
    %35 = tpu.matmul %34, %32, %cst_35 {dimension_numbers = #tpu.dot_dimension_numbers<[1], [0], [0], [1], [0, 0, 1, 1], [], []>} : vector<4x8xbf16>, vector<8x256xbf16>, vector<4x256xf32> -> vector<4x256xf32>
    %c0_36 = arith.constant 0 : index
    %c0_37 = arith.constant 0 : index
    %36 = vector.load %arg15[%c0_36, %c0_37] : memref<4x256xf32, #tpu.memory_space<vmem>>, vector<4x256xf32>
    %37 = arith.addf %36, %35 : vector<4x256xf32>
    %c0_38 = arith.constant 0 : index
    %c0_39 = arith.constant 0 : index
    %38 = vector.load %arg15[%c0_38, %c0_39] : memref<4x256xf32, #tpu.memory_space<vmem>>, vector<4x256xf32>
    tpu.vector_store %arg15[%c0_38, %c0_39], %37 {strides = array<i32>} : memref<4x256xf32, #tpu.memory_space<vmem>>, vector<4x256xf32>,
    %c0_40 = arith.constant 0 : index
    %c127 = arith.constant 127 : index
    %39 = vector.load %arg13[%c0_40, %c127] : memref<8x512xbf16, #tpu.memory_space<vmem>>, vector<8x256xbf16>
    %c3 = arith.constant 3 : index
    %c0_41 = arith.constant 0 : index
    %c0_42 = arith.constant 0 : index
    %40 = vector.load %arg5[%c3, %c0_41, %c0_42] : memref<9x4x8xbf16, #tpu.memory_space<vmem>>, vector<1x4x8xbf16>
    %41 = vector.shape_cast %40 : vector<1x4x8xbf16> to vector<4x8xbf16>
    %cst_43 = arith.constant dense<0.000000e+00> : vector<4x256xf32>
    %42 = tpu.matmul %41, %39, %cst_43 {dimension_numbers = #tpu.dot_dimension_numbers<[1], [0], [0], [1], [0, 0, 1, 1], [], []>} : vector<4x8xbf16>, vector<8x256xbf16>, vector<4x256xf32> -> vector<4x256xf32>
    %c0_44 = arith.constant 0 : index
    %c0_45 = arith.constant 0 : index
    %43 = vector.load %arg15[%c0_44, %c0_45] : memref<4x256xf32, #tpu.memory_space<vmem>>, vector<4x256xf32>
    %44 = arith.addf %43, %42 : vector<4x256xf32>
    %c0_46 = arith.constant 0 : index
    %c0_47 = arith.constant 0 : index
    %45 = vector.load %arg15[%c0_46, %c0_47] : memref<4x256xf32, #tpu.memory_space<vmem>>, vector<4x256xf32>
    tpu.vector_store %arg15[%c0_46, %c0_47], %44 {strides = array<i32>} : memref<4x256xf32, #tpu.memory_space<vmem>>, vector<4x256xf32>,
    %c0_48 = arith.constant 0 : index
    %c128_49 = arith.constant 128 : index
    %46 = vector.load %arg13[%c0_48, %c128_49] : memref<8x512xbf16, #tpu.memory_space<vmem>>, vector<8x256xbf16>
    %c4 = arith.constant 4 : index
    %c0_50 = arith.constant 0 : index
    %c0_51 = arith.constant 0 : index
    %47 = vector.load %arg5[%c4, %c0_50, %c0_51] : memref<9x4x8xbf16, #tpu.memory_space<vmem>>, vector<1x4x8xbf16>
    %48 = vector.shape_cast %47 : vector<1x4x8xbf16> to vector<4x8xbf16>
    %cst_52 = arith.constant dense<0.000000e+00> : vector<4x256xf32>
    %49 = tpu.matmul %48, %46, %cst_52 {dimension_numbers = #tpu.dot_dimension_numbers<[1], [0], [0], [1], [0, 0, 1, 1], [], []>} : vector<4x8xbf16>, vector<8x256xbf16>, vector<4x256xf32> -> vector<4x256xf32>
    %c0_53 = arith.constant 0 : index
    %c0_54 = arith.constant 0 : index
    %50 = vector.load %arg15[%c0_53, %c0_54] : memref<4x256xf32, #tpu.memory_space<vmem>>, vector<4x256xf32>
    %51 = arith.addf %50, %49 : vector<4x256xf32>
    %c0_55 = arith.constant 0 : index
    %c0_56 = arith.constant 0 : index
    %52 = vector.load %arg15[%c0_55, %c0_56] : memref<4x256xf32, #tpu.memory_space<vmem>>, vector<4x256xf32>
    tpu.vector_store %arg15[%c0_55, %c0_56], %51 {strides = array<i32>} : memref<4x256xf32, #tpu.memory_space<vmem>>, vector<4x256xf32>,
    %c0_57 = arith.constant 0 : index
    %c129 = arith.constant 129 : index
    %53 = vector.load %arg13[%c0_57, %c129] : memref<8x512xbf16, #tpu.memory_space<vmem>>, vector<8x256xbf16>
    %c5 = arith.constant 5 : index
    %c0_58 = arith.constant 0 : index
    %c0_59 = arith.constant 0 : index
    %54 = vector.load %arg5[%c5, %c0_58, %c0_59] : memref<9x4x8xbf16, #tpu.memory_space<vmem>>, vector<1x4x8xbf16>
    %55 = vector.shape_cast %54 : vector<1x4x8xbf16> to vector<4x8xbf16>
    %cst_60 = arith.constant dense<0.000000e+00> : vector<4x256xf32>
    %56 = tpu.matmul %55, %53, %cst_60 {dimension_numbers = #tpu.dot_dimension_numbers<[1], [0], [0], [1], [0, 0, 1, 1], [], []>} : vector<4x8xbf16>, vector<8x256xbf16>, vector<4x256xf32> -> vector<4x256xf32>
    %c0_61 = arith.constant 0 : index
    %c0_62 = arith.constant 0 : index
    %57 = vector.load %arg15[%c0_61, %c0_62] : memref<4x256xf32, #tpu.memory_space<vmem>>, vector<4x256xf32>
    %58 = arith.addf %57, %56 : vector<4x256xf32>
    %c0_63 = arith.constant 0 : index
    %c0_64 = arith.constant 0 : index
    %59 = vector.load %arg15[%c0_63, %c0_64] : memref<4x256xf32, #tpu.memory_space<vmem>>, vector<4x256xf32>
    tpu.vector_store %arg15[%c0_63, %c0_64], %58 {strides = array<i32>} : memref<4x256xf32, #tpu.memory_space<vmem>>, vector<4x256xf32>,
    %c0_65 = arith.constant 0 : index
    %c130 = arith.constant 130 : index
    %60 = vector.load %arg13[%c0_65, %c130] : memref<8x512xbf16, #tpu.memory_space<vmem>>, vector<8x256xbf16>
    %c6 = arith.constant 6 : index
    %c0_66 = arith.constant 0 : index
    %c0_67 = arith.constant 0 : index
    %61 = vector.load %arg5[%c6, %c0_66, %c0_67] : memref<9x4x8xbf16, #tpu.memory_space<vmem>>, vector<1x4x8xbf16>
    %62 = vector.shape_cast %61 : vector<1x4x8xbf16> to vector<4x8xbf16>
    %cst_68 = arith.constant dense<0.000000e+00> : vector<4x256xf32>
    %63 = tpu.matmul %62, %60, %cst_68 {dimension_numbers = #tpu.dot_dimension_numbers<[1], [0], [0], [1], [0, 0, 1, 1], [], []>} : vector<4x8xbf16>, vector<8x256xbf16>, vector<4x256xf32> -> vector<4x256xf32>
    %c0_69 = arith.constant 0 : index
    %c0_70 = arith.constant 0 : index
    %64 = vector.load %arg15[%c0_69, %c0_70] : memref<4x256xf32, #tpu.memory_space<vmem>>, vector<4x256xf32>
    %65 = arith.addf %64, %63 : vector<4x256xf32>
    %c0_71 = arith.constant 0 : index
    %c0_72 = arith.constant 0 : index
    %66 = vector.load %arg15[%c0_71, %c0_72] : memref<4x256xf32, #tpu.memory_space<vmem>>, vector<4x256xf32>
    tpu.vector_store %arg15[%c0_71, %c0_72], %65 {strides = array<i32>} : memref<4x256xf32, #tpu.memory_space<vmem>>, vector<4x256xf32>,
    %c0_73 = arith.constant 0 : index
    %c131 = arith.constant 131 : index
    %67 = vector.load %arg13[%c0_73, %c131] : memref<8x512xbf16, #tpu.memory_space<vmem>>, vector<8x256xbf16>
    %c7 = arith.constant 7 : index
    %c0_74 = arith.constant 0 : index
    %c0_75 = arith.constant 0 : index
    %68 = vector.load %arg5[%c7, %c0_74, %c0_75] : memref<9x4x8xbf16, #tpu.memory_space<vmem>>, vector<1x4x8xbf16>
    %69 = vector.shape_cast %68 : vector<1x4x8xbf16> to vector<4x8xbf16>
    %cst_76 = arith.constant dense<0.000000e+00> : vector<4x256xf32>
    %70 = tpu.matmul %69, %67, %cst_76 {dimension_numbers = #tpu.dot_dimension_numbers<[1], [0], [0], [1], [0, 0, 1, 1], [], []>} : vector<4x8xbf16>, vector<8x256xbf16>, vector<4x256xf32> -> vector<4x256xf32>
    %c0_77 = arith.constant 0 : index
    %c0_78 = arith.constant 0 : index
    %71 = vector.load %arg15[%c0_77, %c0_78] : memref<4x256xf32, #tpu.memory_space<vmem>>, vector<4x256xf32>
    %72 = arith.addf %71, %70 : vector<4x256xf32>
    %c0_79 = arith.constant 0 : index
    %c0_80 = arith.constant 0 : index
    %73 = vector.load %arg15[%c0_79, %c0_80] : memref<4x256xf32, #tpu.memory_space<vmem>>, vector<4x256xf32>
    tpu.vector_store %arg15[%c0_79, %c0_80], %72 {strides = array<i32>} : memref<4x256xf32, #tpu.memory_space<vmem>>, vector<4x256xf32>,
    %c0_81 = arith.constant 0 : index
    %c132 = arith.constant 132 : index
    %74 = vector.load %arg13[%c0_81, %c132] : memref<8x512xbf16, #tpu.memory_space<vmem>>, vector<8x256xbf16>
    %c8 = arith.constant 8 : index
    %c0_82 = arith.constant 0 : index
    %c0_83 = arith.constant 0 : index
    %75 = vector.load %arg5[%c8, %c0_82, %c0_83] : memref<9x4x8xbf16, #tpu.memory_space<vmem>>, vector<1x4x8xbf16>
    %76 = vector.shape_cast %75 : vector<1x4x8xbf16> to vector<4x8xbf16>
    %cst_84 = arith.constant dense<0.000000e+00> : vector<4x256xf32>
    %77 = tpu.matmul %76, %74, %cst_84 {dimension_numbers = #tpu.dot_dimension_numbers<[1], [0], [0], [1], [0, 0, 1, 1], [], []>} : vector<4x8xbf16>, vector<8x256xbf16>, vector<4x256xf32> -> vector<4x256xf32>
    %c0_85 = arith.constant 0 : index
    %c0_86 = arith.constant 0 : index
    %78 = vector.load %arg15[%c0_85, %c0_86] : memref<4x256xf32, #tpu.memory_space<vmem>>, vector<4x256xf32>
    %79 = arith.addf %78, %77 : vector<4x256xf32>
    %c0_87 = arith.constant 0 : index
    %c0_88 = arith.constant 0 : index
    %80 = vector.load %arg15[%c0_87, %c0_88] : memref<4x256xf32, #tpu.memory_space<vmem>>, vector<4x256xf32>
    tpu.vector_store %arg15[%c0_87, %c0_88], %79 {strides = array<i32>} : memref<4x256xf32, #tpu.memory_space<vmem>>, vector<4x256xf32>,
    %cst_89 = arith.constant 0.000000e+00 : bf16
    %81 = vector.broadcast %cst_89 : bf16 to vector<4x128xbf16>
    %c0_90 = arith.constant 0 : index
    %c0_91 = arith.constant 0 : index
    %82 = vector.load %arg14[%c0_90, %c0_91] : memref<4x512xbf16, #tpu.memory_space<vmem>>, vector<4x128xbf16>
    tpu.vector_store %arg14[%c0_90, %c0_91], %81 {strides = array<i32>} : memref<4x512xbf16, #tpu.memory_space<vmem>>, vector<4x128xbf16>,
    %cst_92 = arith.constant 0.000000e+00 : bf16
    %83 = vector.broadcast %cst_92 : bf16 to vector<4x128xbf16>
    %c0_93 = arith.constant 0 : index
    %c384_94 = arith.constant 384 : index
    %84 = vector.load %arg14[%c0_93, %c384_94] : memref<4x512xbf16, #tpu.memory_space<vmem>>, vector<4x128xbf16>
    tpu.vector_store %arg14[%c0_93, %c384_94], %83 {strides = array<i32>} : memref<4x512xbf16, #tpu.memory_space<vmem>>, vector<4x128xbf16>,
    %c0_95 = arith.constant 0 : index
    %c0_96 = arith.constant 0 : index
    %85 = vector.load %arg15[%c0_95, %c0_96] : memref<4x256xf32, #tpu.memory_space<vmem>>, vector<4x256xf32>
    %86 = vector.broadcast %0 : vector<1x256xf32> to vector<4x256xf32>
    %87 = arith.mulf %85, %86 : vector<4x256xf32>
    %cst_97 = arith.constant dense<0.000000e+00> : vector<4xf32>
    %88 = vector.multi_reduction <add>, %87, %cst_97 [1] : vector<4x256xf32> to vector<4xf32>
    %89 = vector.shape_cast %88 : vector<4xf32> to vector<4x1xf32>
    %cst_98 = arith.constant 0.027777778 : f32
    %90 = vector.broadcast %cst_98 : f32 to vector<4x1xf32>
    %91 = arith.mulf %89, %90 : vector<4x1xf32>
    %92 = arith.mulf %85, %85 : vector<4x256xf32>
    %93 = vector.broadcast %0 : vector<1x256xf32> to vector<4x256xf32>
    %94 = arith.mulf %92, %93 : vector<4x256xf32>
    %cst_99 = arith.constant dense<0.000000e+00> : vector<4xf32>
    %95 = vector.multi_reduction <add>, %94, %cst_99 [1] : vector<4x256xf32> to vector<4xf32>
    %96 = vector.shape_cast %95 : vector<4xf32> to vector<4x1xf32>
    %cst_100 = arith.constant 0.027777778 : f32
    %97 = vector.broadcast %cst_100 : f32 to vector<4x1xf32>
    %98 = arith.mulf %96, %97 : vector<4x1xf32>
    %99 = arith.mulf %91, %91 : vector<4x1xf32>
    %100 = arith.subf %98, %99 : vector<4x1xf32>
    %cst_101 = arith.constant 9.99999974E-6 : f32
    %101 = vector.broadcast %cst_101 : f32 to vector<4x1xf32>
    %102 = arith.addf %100, %101 : vector<4x1xf32>
    %103 = math.rsqrt %102 : vector<4x1xf32>
    %c0_102 = arith.constant 0 : index
    %c0_103 = arith.constant 0 : index
    %104 = vector.load %arg6[%c0_102, %c0_103] : memref<4x1xf32, #tpu.memory_space<vmem>>, vector<4x1xf32>
    %105 = arith.mulf %103, %104 : vector<4x1xf32>
    %106 = vector.broadcast %91 : vector<4x1xf32> to vector<4x256xf32>
    %107 = arith.subf %85, %106 : vector<4x256xf32>
    %108 = vector.broadcast %105 : vector<4x1xf32> to vector<4x256xf32>
    %109 = arith.mulf %107, %108 : vector<4x256xf32>
    %c0_104 = arith.constant 0 : index
    %c0_105 = arith.constant 0 : index
    %110 = vector.load %arg7[%c0_104, %c0_105] : memref<4x1xf32, #tpu.memory_space<vmem>>, vector<4x1xf32>
    %111 = vector.broadcast %110 : vector<4x1xf32> to vector<4x256xf32>
    %112 = arith.addf %109, %111 : vector<4x256xf32>
    %cst_106 = arith.constant 0.000000e+00 : f32
    %113 = vector.broadcast %cst_106 : f32 to vector<4x256xf32>
    %114 = arith.maximumf %112, %113 : vector<4x256xf32>
    %115 = vector.broadcast %0 : vector<1x256xf32> to vector<4x256xf32>
    %116 = arith.mulf %114, %115 : vector<4x256xf32>
    %117 = arith.truncf %116 : vector<4x256xf32> to vector<4x256xbf16>
    %c0_107 = arith.constant 0 : index
    %c128_108 = arith.constant 128 : index
    %118 = vector.load %arg14[%c0_107, %c128_108] : memref<4x512xbf16, #tpu.memory_space<vmem>>, vector<4x256xbf16>
    tpu.vector_store %arg14[%c0_107, %c128_108], %117 {strides = array<i32>} : memref<4x512xbf16, #tpu.memory_space<vmem>>, vector<4x256xbf16>,
    %c0_109 = arith.constant 0 : index
    %c124_110 = arith.constant 124 : index
    %119 = vector.load %arg14[%c0_109, %c124_110] : memref<4x512xbf16, #tpu.memory_space<vmem>>, vector<4x256xbf16>
    %c0_111 = arith.constant 0 : index
    %c0_112 = arith.constant 0 : index
    %c0_113 = arith.constant 0 : index
    %120 = vector.load %arg8[%c0_111, %c0_112, %c0_113] : memref<9x4x4xbf16, #tpu.memory_space<vmem>>, vector<1x4x4xbf16>
    %121 = vector.shape_cast %120 : vector<1x4x4xbf16> to vector<4x4xbf16>
    %cst_114 = arith.constant dense<0.000000e+00> : vector<4x256xf32>
    %122 = tpu.matmul %121, %119, %cst_114 {dimension_numbers = #tpu.dot_dimension_numbers<[1], [0], [0], [1], [0, 0, 1, 1], [], []>} : vector<4x4xbf16>, vector<4x256xbf16>, vector<4x256xf32> -> vector<4x256xf32>
    %c0_115 = arith.constant 0 : index
    %c0_116 = arith.constant 0 : index
    %123 = vector.load %arg11[%c0_115, %c0_116] : memref<4x256xf32, #tpu.memory_space<vmem>>, vector<4x256xf32>
    tpu.vector_store %arg11[%c0_115, %c0_116], %122 {strides = array<i32>} : memref<4x256xf32, #tpu.memory_space<vmem>>, vector<4x256xf32>,
    %c0_117 = arith.constant 0 : index
    %c125_118 = arith.constant 125 : index
    %124 = vector.load %arg14[%c0_117, %c125_118] : memref<4x512xbf16, #tpu.memory_space<vmem>>, vector<4x256xbf16>
    %c1_119 = arith.constant 1 : index
    %c0_120 = arith.constant 0 : index
    %c0_121 = arith.constant 0 : index
    %125 = vector.load %arg8[%c1_119, %c0_120, %c0_121] : memref<9x4x4xbf16, #tpu.memory_space<vmem>>, vector<1x4x4xbf16>
    %126 = vector.shape_cast %125 : vector<1x4x4xbf16> to vector<4x4xbf16>
    %cst_122 = arith.constant dense<0.000000e+00> : vector<4x256xf32>
    %127 = tpu.matmul %126, %124, %cst_122 {dimension_numbers = #tpu.dot_dimension_numbers<[1], [0], [0], [1], [0, 0, 1, 1], [], []>} : vector<4x4xbf16>, vector<4x256xbf16>, vector<4x256xf32> -> vector<4x256xf32>
    %c0_123 = arith.constant 0 : index
    %c0_124 = arith.constant 0 : index
    %128 = vector.load %arg11[%c0_123, %c0_124] : memref<4x256xf32, #tpu.memory_space<vmem>>, vector<4x256xf32>
    %129 = arith.addf %128, %127 : vector<4x256xf32>
    %c0_125 = arith.constant 0 : index
    %c0_126 = arith.constant 0 : index
    %130 = vector.load %arg11[%c0_125, %c0_126] : memref<4x256xf32, #tpu.memory_space<vmem>>, vector<4x256xf32>
    tpu.vector_store %arg11[%c0_125, %c0_126], %129 {strides = array<i32>} : memref<4x256xf32, #tpu.memory_space<vmem>>, vector<4x256xf32>,
    %c0_127 = arith.constant 0 : index
    %c126_128 = arith.constant 126 : index
    %131 = vector.load %arg14[%c0_127, %c126_128] : memref<4x512xbf16, #tpu.memory_space<vmem>>, vector<4x256xbf16>
    %c2_129 = arith.constant 2 : index
    %c0_130 = arith.constant 0 : index
    %c0_131 = arith.constant 0 : index
    %132 = vector.load %arg8[%c2_129, %c0_130, %c0_131] : memref<9x4x4xbf16, #tpu.memory_space<vmem>>, vector<1x4x4xbf16>
    %133 = vector.shape_cast %132 : vector<1x4x4xbf16> to vector<4x4xbf16>
    %cst_132 = arith.constant dense<0.000000e+00> : vector<4x256xf32>
    %134 = tpu.matmul %133, %131, %cst_132 {dimension_numbers = #tpu.dot_dimension_numbers<[1], [0], [0], [1], [0, 0, 1, 1], [], []>} : vector<4x4xbf16>, vector<4x256xbf16>, vector<4x256xf32> -> vector<4x256xf32>
    %c0_133 = arith.constant 0 : index
    %c0_134 = arith.constant 0 : index
    %135 = vector.load %arg11[%c0_133, %c0_134] : memref<4x256xf32, #tpu.memory_space<vmem>>, vector<4x256xf32>
    %136 = arith.addf %135, %134 : vector<4x256xf32>
    %c0_135 = arith.constant 0 : index
    %c0_136 = arith.constant 0 : index
    %137 = vector.load %arg11[%c0_135, %c0_136] : memref<4x256xf32, #tpu.memory_space<vmem>>, vector<4x256xf32>
    tpu.vector_store %arg11[%c0_135, %c0_136], %136 {strides = array<i32>} : memref<4x256xf32, #tpu.memory_space<vmem>>, vector<4x256xf32>,
    %c0_137 = arith.constant 0 : index
    %c127_138 = arith.constant 127 : index
    %138 = vector.load %arg14[%c0_137, %c127_138] : memref<4x512xbf16, #tpu.memory_space<vmem>>, vector<4x256xbf16>
    %c3_139 = arith.constant 3 : index
    %c0_140 = arith.constant 0 : index
    %c0_141 = arith.constant 0 : index
    %139 = vector.load %arg8[%c3_139, %c0_140, %c0_141] : memref<9x4x4xbf16, #tpu.memory_space<vmem>>, vector<1x4x4xbf16>
    %140 = vector.shape_cast %139 : vector<1x4x4xbf16> to vector<4x4xbf16>
    %cst_142 = arith.constant dense<0.000000e+00> : vector<4x256xf32>
    %141 = tpu.matmul %140, %138, %cst_142 {dimension_numbers = #tpu.dot_dimension_numbers<[1], [0], [0], [1], [0, 0, 1, 1], [], []>} : vector<4x4xbf16>, vector<4x256xbf16>, vector<4x256xf32> -> vector<4x256xf32>
    %c0_143 = arith.constant 0 : index
    %c0_144 = arith.constant 0 : index
    %142 = vector.load %arg11[%c0_143, %c0_144] : memref<4x256xf32, #tpu.memory_space<vmem>>, vector<4x256xf32>
    %143 = arith.addf %142, %141 : vector<4x256xf32>
    %c0_145 = arith.constant 0 : index
    %c0_146 = arith.constant 0 : index
    %144 = vector.load %arg11[%c0_145, %c0_146] : memref<4x256xf32, #tpu.memory_space<vmem>>, vector<4x256xf32>
    tpu.vector_store %arg11[%c0_145, %c0_146], %143 {strides = array<i32>} : memref<4x256xf32, #tpu.memory_space<vmem>>, vector<4x256xf32>,
    %c0_147 = arith.constant 0 : index
    %c128_148 = arith.constant 128 : index
    %145 = vector.load %arg14[%c0_147, %c128_148] : memref<4x512xbf16, #tpu.memory_space<vmem>>, vector<4x256xbf16>
    %c4_149 = arith.constant 4 : index
    %c0_150 = arith.constant 0 : index
    %c0_151 = arith.constant 0 : index
    %146 = vector.load %arg8[%c4_149, %c0_150, %c0_151] : memref<9x4x4xbf16, #tpu.memory_space<vmem>>, vector<1x4x4xbf16>
    %147 = vector.shape_cast %146 : vector<1x4x4xbf16> to vector<4x4xbf16>
    %cst_152 = arith.constant dense<0.000000e+00> : vector<4x256xf32>
    %148 = tpu.matmul %147, %145, %cst_152 {dimension_numbers = #tpu.dot_dimension_numbers<[1], [0], [0], [1], [0, 0, 1, 1], [], []>} : vector<4x4xbf16>, vector<4x256xbf16>, vector<4x256xf32> -> vector<4x256xf32>
    %c0_153 = arith.constant 0 : index
    %c0_154 = arith.constant 0 : index
    %149 = vector.load %arg11[%c0_153, %c0_154] : memref<4x256xf32, #tpu.memory_space<vmem>>, vector<4x256xf32>
    %150 = arith.addf %149, %148 : vector<4x256xf32>
    %c0_155 = arith.constant 0 : index
    %c0_156 = arith.constant 0 : index
    %151 = vector.load %arg11[%c0_155, %c0_156] : memref<4x256xf32, #tpu.memory_space<vmem>>, vector<4x256xf32>
    tpu.vector_store %arg11[%c0_155, %c0_156], %150 {strides = array<i32>} : memref<4x256xf32, #tpu.memory_space<vmem>>, vector<4x256xf32>,
    %c0_157 = arith.constant 0 : index
    %c129_158 = arith.constant 129 : index
    %152 = vector.load %arg14[%c0_157, %c129_158] : memref<4x512xbf16, #tpu.memory_space<vmem>>, vector<4x256xbf16>
    %c5_159 = arith.constant 5 : index
    %c0_160 = arith.constant 0 : index
    %c0_161 = arith.constant 0 : index
    %153 = vector.load %arg8[%c5_159, %c0_160, %c0_161] : memref<9x4x4xbf16, #tpu.memory_space<vmem>>, vector<1x4x4xbf16>
    %154 = vector.shape_cast %153 : vector<1x4x4xbf16> to vector<4x4xbf16>
    %cst_162 = arith.constant dense<0.000000e+00> : vector<4x256xf32>
    %155 = tpu.matmul %154, %152, %cst_162 {dimension_numbers = #tpu.dot_dimension_numbers<[1], [0], [0], [1], [0, 0, 1, 1], [], []>} : vector<4x4xbf16>, vector<4x256xbf16>, vector<4x256xf32> -> vector<4x256xf32>
    %c0_163 = arith.constant 0 : index
    %c0_164 = arith.constant 0 : index
    %156 = vector.load %arg11[%c0_163, %c0_164] : memref<4x256xf32, #tpu.memory_space<vmem>>, vector<4x256xf32>
    %157 = arith.addf %156, %155 : vector<4x256xf32>
    %c0_165 = arith.constant 0 : index
    %c0_166 = arith.constant 0 : index
    %158 = vector.load %arg11[%c0_165, %c0_166] : memref<4x256xf32, #tpu.memory_space<vmem>>, vector<4x256xf32>
    tpu.vector_store %arg11[%c0_165, %c0_166], %157 {strides = array<i32>} : memref<4x256xf32, #tpu.memory_space<vmem>>, vector<4x256xf32>,
    %c0_167 = arith.constant 0 : index
    %c130_168 = arith.constant 130 : index
    %159 = vector.load %arg14[%c0_167, %c130_168] : memref<4x512xbf16, #tpu.memory_space<vmem>>, vector<4x256xbf16>
    %c6_169 = arith.constant 6 : index
    %c0_170 = arith.constant 0 : index
    %c0_171 = arith.constant 0 : index
    %160 = vector.load %arg8[%c6_169, %c0_170, %c0_171] : memref<9x4x4xbf16, #tpu.memory_space<vmem>>, vector<1x4x4xbf16>
    %161 = vector.shape_cast %160 : vector<1x4x4xbf16> to vector<4x4xbf16>
    %cst_172 = arith.constant dense<0.000000e+00> : vector<4x256xf32>
    %162 = tpu.matmul %161, %159, %cst_172 {dimension_numbers = #tpu.dot_dimension_numbers<[1], [0], [0], [1], [0, 0, 1, 1], [], []>} : vector<4x4xbf16>, vector<4x256xbf16>, vector<4x256xf32> -> vector<4x256xf32>
    %c0_173 = arith.constant 0 : index
    %c0_174 = arith.constant 0 : index
    %163 = vector.load %arg11[%c0_173, %c0_174] : memref<4x256xf32, #tpu.memory_space<vmem>>, vector<4x256xf32>
    %164 = arith.addf %163, %162 : vector<4x256xf32>
    %c0_175 = arith.constant 0 : index
    %c0_176 = arith.constant 0 : index
    %165 = vector.load %arg11[%c0_175, %c0_176] : memref<4x256xf32, #tpu.memory_space<vmem>>, vector<4x256xf32>
    tpu.vector_store %arg11[%c0_175, %c0_176], %164 {strides = array<i32>} : memref<4x256xf32, #tpu.memory_space<vmem>>, vector<4x256xf32>,
    %c0_177 = arith.constant 0 : index
    %c131_178 = arith.constant 131 : index
    %166 = vector.load %arg14[%c0_177, %c131_178] : memref<4x512xbf16, #tpu.memory_space<vmem>>, vector<4x256xbf16>
    %c7_179 = arith.constant 7 : index
    %c0_180 = arith.constant 0 : index
    %c0_181 = arith.constant 0 : index
    %167 = vector.load %arg8[%c7_179, %c0_180, %c0_181] : memref<9x4x4xbf16, #tpu.memory_space<vmem>>, vector<1x4x4xbf16>
    %168 = vector.shape_cast %167 : vector<1x4x4xbf16> to vector<4x4xbf16>
    %cst_182 = arith.constant dense<0.000000e+00> : vector<4x256xf32>
    %169 = tpu.matmul %168, %166, %cst_182 {dimension_numbers = #tpu.dot_dimension_numbers<[1], [0], [0], [1], [0, 0, 1, 1], [], []>} : vector<4x4xbf16>, vector<4x256xbf16>, vector<4x256xf32> -> vector<4x256xf32>
    %c0_183 = arith.constant 0 : index
    %c0_184 = arith.constant 0 : index
    %170 = vector.load %arg11[%c0_183, %c0_184] : memref<4x256xf32, #tpu.memory_space<vmem>>, vector<4x256xf32>
    %171 = arith.addf %170, %169 : vector<4x256xf32>
    %c0_185 = arith.constant 0 : index
    %c0_186 = arith.constant 0 : index
    %172 = vector.load %arg11[%c0_185, %c0_186] : memref<4x256xf32, #tpu.memory_space<vmem>>, vector<4x256xf32>
    tpu.vector_store %arg11[%c0_185, %c0_186], %171 {strides = array<i32>} : memref<4x256xf32, #tpu.memory_space<vmem>>, vector<4x256xf32>,
    %c0_187 = arith.constant 0 : index
    %c132_188 = arith.constant 132 : index
    %173 = vector.load %arg14[%c0_187, %c132_188] : memref<4x512xbf16, #tpu.memory_space<vmem>>, vector<4x256xbf16>
    %c8_189 = arith.constant 8 : index
    %c0_190 = arith.constant 0 : index
    %c0_191 = arith.constant 0 : index
    %174 = vector.load %arg8[%c8_189, %c0_190, %c0_191] : memref<9x4x4xbf16, #tpu.memory_space<vmem>>, vector<1x4x4xbf16>
    %175 = vector.shape_cast %174 : vector<1x4x4xbf16> to vector<4x4xbf16>
    %cst_192 = arith.constant dense<0.000000e+00> : vector<4x256xf32>
    %176 = tpu.matmul %175, %173, %cst_192 {dimension_numbers = #tpu.dot_dimension_numbers<[1], [0], [0], [1], [0, 0, 1, 1], [], []>} : vector<4x4xbf16>, vector<4x256xbf16>, vector<4x256xf32> -> vector<4x256xf32>
    %c0_193 = arith.constant 0 : index
    %c0_194 = arith.constant 0 : index
    %177 = vector.load %arg11[%c0_193, %c0_194] : memref<4x256xf32, #tpu.memory_space<vmem>>, vector<4x256xf32>
    %178 = arith.addf %177, %176 : vector<4x256xf32>
    %c0_195 = arith.constant 0 : index
    %c0_196 = arith.constant 0 : index
    %179 = vector.load %arg11[%c0_195, %c0_196] : memref<4x256xf32, #tpu.memory_space<vmem>>, vector<4x256xf32>
    tpu.vector_store %arg11[%c0_195, %c0_196], %178 {strides = array<i32>} : memref<4x256xf32, #tpu.memory_space<vmem>>, vector<4x256xf32>,
    %c0_197 = arith.constant 0 : index
    %c0_198 = arith.constant 0 : index
    %180 = vector.load %arg11[%c0_197, %c0_198] : memref<4x256xf32, #tpu.memory_space<vmem>>, vector<4x256xf32>
    %181 = vector.broadcast %0 : vector<1x256xf32> to vector<4x256xf32>
    %182 = arith.mulf %180, %181 : vector<4x256xf32>
    %cst_199 = arith.constant dense<0.000000e+00> : vector<4xf32>
    %183 = vector.multi_reduction <add>, %182, %cst_199 [1] : vector<4x256xf32> to vector<4xf32>
    %184 = vector.shape_cast %183 : vector<4xf32> to vector<4x1xf32>
    %cst_200 = arith.constant 0.027777778 : f32
    %185 = vector.broadcast %cst_200 : f32 to vector<4x1xf32>
    %186 = arith.mulf %184, %185 : vector<4x1xf32>
    %187 = arith.mulf %180, %180 : vector<4x256xf32>
    %188 = vector.broadcast %0 : vector<1x256xf32> to vector<4x256xf32>
    %189 = arith.mulf %187, %188 : vector<4x256xf32>
    %cst_201 = arith.constant dense<0.000000e+00> : vector<4xf32>
    %190 = vector.multi_reduction <add>, %189, %cst_201 [1] : vector<4x256xf32> to vector<4xf32>
    %191 = vector.shape_cast %190 : vector<4xf32> to vector<4x1xf32>
    %cst_202 = arith.constant 0.027777778 : f32
    %192 = vector.broadcast %cst_202 : f32 to vector<4x1xf32>
    %193 = arith.mulf %191, %192 : vector<4x1xf32>
    %194 = arith.mulf %186, %186 : vector<4x1xf32>
    %195 = arith.subf %193, %194 : vector<4x1xf32>
    %cst_203 = arith.constant 9.99999974E-6 : f32
    %196 = vector.broadcast %cst_203 : f32 to vector<4x1xf32>
    %197 = arith.addf %195, %196 : vector<4x1xf32>
    %198 = math.rsqrt %197 : vector<4x1xf32>
    %c0_204 = arith.constant 0 : index
    %c0_205 = arith.constant 0 : index
    %199 = vector.load %arg9[%c0_204, %c0_205] : memref<4x1xf32, #tpu.memory_space<vmem>>, vector<4x1xf32>
    %200 = arith.mulf %198, %199 : vector<4x1xf32>
    %201 = vector.broadcast %186 : vector<4x1xf32> to vector<4x256xf32>
    %202 = arith.subf %180, %201 : vector<4x256xf32>
    %203 = vector.broadcast %200 : vector<4x1xf32> to vector<4x256xf32>
    %204 = arith.mulf %202, %203 : vector<4x256xf32>
    %c0_206 = arith.constant 0 : index
    %c0_207 = arith.constant 0 : index
    %205 = vector.load %arg10[%c0_206, %c0_207] : memref<4x1xf32, #tpu.memory_space<vmem>>, vector<4x1xf32>
    %206 = vector.broadcast %205 : vector<4x1xf32> to vector<4x256xf32>
    %207 = arith.addf %204, %206 : vector<4x256xf32>
    %cst_208 = arith.constant 0.000000e+00 : f32
    %208 = vector.broadcast %cst_208 : f32 to vector<4x256xf32>
    %209 = arith.maximumf %207, %208 : vector<4x256xf32>
    %c0_209 = arith.constant 0 : index
    %c0_210 = arith.constant 0 : index
    %210 = vector.load %arg11[%c0_209, %c0_210] : memref<4x256xf32, #tpu.memory_space<vmem>>, vector<4x256xf32>
    tpu.vector_store %arg11[%c0_209, %c0_210], %209 {strides = array<i32>} : memref<4x256xf32, #tpu.memory_space<vmem>>, vector<4x256xf32>,
    return
  }
}

</mosaic_0001>

<llo_original>
// kernel: tpu_custom_call.1
$region0: #{tpu_custom_call.1}
  #allocation0 [shape = 'u32[]', space=smem, size = 0x4, offset = 0x4, fixed_abs, tag = 'smem constant byte address 0x4 - core index']
  #allocation1 [shape = 'u32[144,128]{1,0:T(1,128)}', space=vmem, size = 0x12000, scoped, tag = 'internal scratch']
  #allocation2 [shape = 'bf16[8,512]{1,0:T(8,128)(2,1)}', space=vmem, size = 0x2000, scoped, tag = 'scratch operand']
  #allocation3 [shape = 'bf16[4,512]{1,0:T(4,128)(2,1)}', space=vmem, size = 0x1000, scoped, tag = 'scratch operand']
  #allocation4 [shape = 'f32[4,256]{1,0:T(4,128)}', space=vmem, size = 0x1000, scoped, tag = 'scratch operand']
  %s0 = inlined_call_operand.vmem [shape: f32[4,256], index: 0, kind: input, shape index: {}]
  %s1 = inlined_call_operand.vmem [shape: f32[4,256], index: 1, kind: input, shape index: {}]
  %s2 = inlined_call_operand.vmem [shape: f32[4,256], index: 2, kind: input, shape index: {}]
  %s3 = inlined_call_operand.vmem [shape: f32[1,256], index: 3, kind: input, shape index: {}]
  %s4 = inlined_call_operand.vmem [shape: f32[1,256], index: 4, kind: input, shape index: {}]
  %s5 = inlined_call_operand.vmem [shape: bf16[9,4,8], index: 5, kind: input, shape index: {}]
  %s6 = inlined_call_operand.vmem [shape: f32[4,1], index: 6, kind: input, shape index: {}]
  %s7 = inlined_call_operand.vmem [shape: f32[4,1], index: 7, kind: input, shape index: {}]
  %s8 = inlined_call_operand.vmem [shape: bf16[9,4,4], index: 8, kind: input, shape index: {}]
  %s9 = inlined_call_operand.vmem [shape: f32[4,1], index: 9, kind: input, shape index: {}]
  %s10 = inlined_call_operand.vmem [shape: f32[4,1], index: 10, kind: input, shape index: {}]
  %s11 = inlined_call_operand.hbm [shape: f32[4,256], index: 11, kind: output, shape index: {0}]
  %s12 = inlined_call_operand.hbm [shape: f32[8,256], index: 12, kind: output, shape index: {1}]
  %13 = xla_tuple %s11, %s12
  %s14 = sld [smem:[#allocation0]]
  $region62: #{tpu_custom_call.1} parent=0
    _
  %s16 = ssub.s32 1, %s14
  %s17 = scalar_select 0, %s16, %s14
  $region1: #{tpu_custom_call.1} parent=0
    #allocation5 [shape = 'u8[4096]{0}', space=vmem, size = 0x1000, scoped, tag = 'output window, operand 0, single buffered']
    #allocation6 [shape = 's32[1]{0}', space=sflag, size = 0x4, scoped, tag = 'scoped memory for tpu_custom_call.1']
    #allocation7 [shape = 'u8[8192]{0}', space=vmem, size = 0x2000, scoped, tag = 'output window, operand 1, single buffered']
    #allocation8 [shape = 's32[1]{0}', space=sflag, size = 0x4, scoped, tag = 'scoped memory for tpu_custom_call.1']
    %18 = vsyncpa [#allocation6], 0
    %19 = vsyncpa [#allocation8], 0
    // Predicated region
    $region2: #{tpu_custom_call.1} parent=1 // pred_check
      _
    $region3: #{tpu_custom_call.1} parent=1 // pred_check_branch
      %21 = sbr.rel (0) target = $region5
    $region4: #{tpu_custom_call.1} parent=1 // pred_region
      _
    $region5: #{tpu_custom_call.1} parent=1 // pred_fallthru
      _
    // Predicated region
    $region6: #{tpu_custom_call.1} parent=1 // pred_check
      _
    $region7: #{tpu_custom_call.1} parent=1 // pred_check_branch
      %23 = sbr.rel (0) target = $region9
    $region8: #{tpu_custom_call.1} parent=1 // pred_region
      _
    $region9: #{tpu_custom_call.1} parent=1 // pred_fallthru
      _
    // Predicated region
    $region10: #{tpu_custom_call.1} parent=1 // pred_check
      _
    $region11: #{tpu_custom_call.1} parent=1 // pred_check_branch
      %25 = sbr.rel (0) target = $region13
    $region12: #{tpu_custom_call.1} parent=1 // pred_region
      _
    $region13: #{tpu_custom_call.1} parent=1 // pred_fallthru
      _
    // Predicated region
    $region14: #{tpu_custom_call.1} parent=1 // pred_check
      _
    $region15: #{tpu_custom_call.1} parent=1 // pred_check_branch
      %27 = sbr.rel (0) target = $region17
    $region16: #{tpu_custom_call.1} parent=1 // pred_region
      _
    $region17: #{tpu_custom_call.1} parent=1 // pred_fallthru
      _
    // Predicated region
    $region18: #{tpu_custom_call.1} parent=1 // pred_check
      _
    $region19: #{tpu_custom_call.1} parent=1 // pred_check_branch
      %29 = sbr.rel (0) target = $region21
    $region20: #{tpu_custom_call.1} parent=1 // pred_region
      _
    $region21: #{tpu_custom_call.1} parent=1 // pred_fallthru
      _
    // Predicated region
    $region22: #{tpu_custom_call.1} parent=1 // pred_check
      _
    $region23: #{tpu_custom_call.1} parent=1 // pred_check_branch
      %31 = sbr.rel (0) target = $region25
    $region24: #{tpu_custom_call.1} parent=1 // pred_region
      _
    $region25: #{tpu_custom_call.1} parent=1 // pred_fallthru
      _
    // Predicated region
    $region26: #{tpu_custom_call.1} parent=1 // pred_check
      _
    $region27: #{tpu_custom_call.1} parent=1 // pred_check_branch
      %33 = sbr.rel (0) target = $region29
    $region28: #{tpu_custom_call.1} parent=1 // pred_region
      _
    $region29: #{tpu_custom_call.1} parent=1 // pred_fallthru
      _
    // Predicated region
    $region30: #{tpu_custom_call.1} parent=1 // pred_check
      _
    $region31: #{tpu_custom_call.1} parent=1 // pred_check_branch
      %35 = sbr.rel (0) target = $region33
    $region32: #{tpu_custom_call.1} parent=1 // pred_region
      _
    $region33: #{tpu_custom_call.1} parent=1 // pred_fallthru
      _
    // Predicated region
    $region34: #{tpu_custom_call.1} parent=1 // pred_check
      _
    $region35: #{tpu_custom_call.1} parent=1 // pred_check_branch
      %37 = sbr.rel (0) target = $region37
    $region36: #{tpu_custom_call.1} parent=1 // pred_region
      _
    $region37: #{tpu_custom_call.1} parent=1 // pred_fallthru
      _
    // Predicated region
    $region38: #{tpu_custom_call.1} parent=1 // pred_check
      _
    $region39: #{tpu_custom_call.1} parent=1 // pred_check_branch
      %39 = sbr.rel (0) target = $region41
    $region40: #{tpu_custom_call.1} parent=1 // pred_region
      _
    $region41: #{tpu_custom_call.1} parent=1 // pred_fallthru
      _
    // Predicated region
    $region42: #{tpu_custom_call.1} parent=1 // pred_check
      _
    $region43: #{tpu_custom_call.1} parent=1 // pred_check_branch
      %41 = sbr.rel (0) target = $region45
    $region44: #{tpu_custom_call.1} parent=1 // pred_region
      _
    $region45: #{tpu_custom_call.1} parent=1 // pred_fallthru
      _
    %v43 = vld [vmem:[%s4] sm:$0x3]
    %v44 = vld [vmem:[%s3] sm:$0x3]
    %v45 = vld [vmem:[%s1] sm:$0xff]
    %v46 = vsub.f32 1.0, %v44
    %v48 = vlaneseq
    %v49 = vshrl.u32 %v48, 7
    %v50 = vsub.s32 0, %v49
    %v51 = vrot.slane %v46, %v50
    %v52 = vlaneseq
    %v53 = vshrl.u32 %v52, 7
    %v54 = vsub.s32 1, %v53
    %v55 = vrot.slane %v46, %v54
    %v56 = vcombine.low %v51, %v55
    %v58 = vmul.f32 %v45, %v56
    %v59 = vld [vmem:[%s2] sm:$0xff]
    %v61 = vlaneseq
    %v62 = vshrl.u32 %v61, 7
    %v63 = vsub.s32 0, %v62
    %v64 = vrot.slane %v44, %v63
    %v65 = vlaneseq
    %v66 = vshrl.u32 %v65, 7
    %v67 = vsub.s32 1, %v66
    %v68 = vrot.slane %v44, %v67
    %v69 = vcombine.low %v64, %v68
    %v71 = vmul.f32 %v59, %v69
    %v72 = vadd.f32 %v58, %v71
    %v73 = vld [vmem:[%s0] sm:$0xff]
    %v75 = vcombine.high %v73, %v73
    %v78 = vcombine.low %v72, %v72
    %vm80 = vcmask 1043456
    %v81 = vsel %vm80, %v73, %v78
    %v82 = vsel %vm80, %v75, %v72
    %83 = vst [vmem:[#allocation7] sm:$0xff] %v81
    %84 = vst [vmem:[#allocation7 + $0x8] sm:$0xff] %v82
    %85 = vst [vmem:[#allocation2] sm:$0xf] 0
    %86 = vst [vmem:[#allocation2 + $0xc] sm:$0xf] 0
    %v87 = vpack.c.bf16 %v81, %v81
    %v88 = vpack.c.bf16 %v82, %v82
    %v91 = vunpack.c.l.b16 %v87
    %v92 = vunpack.c.l.b16 %v88
    %v93 = vpack.c.b16 %v92, %v91
    %95 = vst [vmem:[#allocation2 + $0x4] sm:$0xff] %v93
    %v96 = vld [vmem:[#allocation2] sm:$0xff]
    %v97 = vld [vmem:[#allocation2 + $0x8] sm:$0xf]
    %v98 = vld [vmem:[%s5] sm:$0x3]
    %v101 = vunpack.c.l.b16 %v96
    %v102 = vunpack.c.h.b16 %v96
    %v103 = vunpack.c.l.b16 %v97
    %v104 = vpack.c.b16 %v101, %v101
    %v105 = vpack.c.b16 %v102, %v102
    %v106 = vpack.c.b16 %v103, %v103
    %107 = vrot.lane.b32.xlu0 %v104, 4
    %v108 = vpop.permute.xlu0 %107
    %109 = vrot.lane.b32.xlu0 %v105, 4
    %v110 = vpop.permute.xlu0 %109
    %111 = vrot.lane.b32.xlu0 %v106, 4
    %v112 = vpop.permute.xlu0 %111
    %vm113 = vcmask 31744
    %v114 = vsel %vm113, %v108, %v110
    %v115 = vsel %vm113, %v110, %v112
    %vm116 = vcmask 64512
    %v118 = vsel %vm116, %v98, 0
    %v121 = vsel %vm80, %v114, 0
    %v124 = vsel %vm80, %v115, 0
    %126 = vmatprep.subr.bf16.mxu0 %v124
    %127 = vmatpush1.bf16.msra.mxu0 %v121
    %128 = vmatprep.subr.bf16.mxu0 0
    %129 = vmatpush1.bf16.msra.mxu0 0
    %130 = vmatprep.subr.bf16.mxu0 0
    %131 = vmatpush1.bf16.msra.mxu0 0
    %132 = vmatprep.subr.bf16.mxu0 0
    %133 = vmatpush1.bf16.msra.mxu0 0
    %134 = vmatprep.subr.bf16.mxu0 0
    %135 = vmatpush1.bf16.msra.mxu0 0
    %136 = vmatprep.subr.bf16.mxu0 0
    %137 = vmatpush1.bf16.msra.mxu0 0
    %138 = vmatprep.subr.bf16.mxu0 0
    %139 = vmatpush1.bf16.msra.mxu0 0
    %140 = vmatprep.subr.bf16.mxu0 0
    %141 = vmatpush1.bf16.msra.mxu0 0
    %142 = vmatprep.subr.bf16.mxu0 0
    %143 = vmatpush1.bf16.msra.mxu0 0
    %144 = vmatprep.subr.bf16.mxu0 0
    %145 = vmatpush1.bf16.msra.mxu0 0
    %146 = vmatprep.subr.bf16.mxu0 0
    %147 = vmatpush1.bf16.msra.mxu0 0
    %148 = vmatprep.subr.bf16.mxu0 0
    %149 = vmatpush1.bf16.msra.mxu0 0
    %150 = vmatprep.subr.bf16.mxu0 0
    %151 = vmatpush1.bf16.msra.mxu0 0
    %152 = vmatprep.subr.bf16.mxu0 0
    %153 = vmatpush1.bf16.msra.mxu0 0
    %154 = vmatprep.subr.bf16.mxu0 0
    %155 = vmatpush1.bf16.msra.mxu0 0
    %156 = vmatprep.subr.bf16.mxu0 0
    %157 = vmatpush1.bf16.msra.mxu0 0
    %158 = vmatprep.mubr.bf16.mxu0 0
    %159 = vmatmul.mubr.bf16.gmra.mrb[0].mxu0 %v118
    %v160 = vpop.f32.mrb[0].mxu0
    %v161 = vadd.f32 0.0, %v160
    %v162 = vpop.f32.mrb[0].mxu0
    %v163 = vadd.f32 0.0, %v162
    %v164 = vpop.f32.mrb[0].mxu0
    %v165 = vpop.f32.mrb[0].mxu0
    %166 = vdwg.mxu0
    %v169 = vcombine.low %v161, %v163
    %171 = vst [vmem:[#allocation4] sm:$0xff] %v169
    %v172 = vld [vmem:[#allocation2] sm:$0xff]
    %v173 = vld [vmem:[#allocation2 + $0x8] sm:$0xf]
    %s174 = scalar_lea.vmem %s5, 2
    %v175 = vld [vmem:[%s174] sm:$0x3]
    %v178 = vunpack.c.l.b16 %v172
    %v179 = vunpack.c.h.b16 %v172
    %v180 = vunpack.c.l.b16 %v173
    %v181 = vpack.c.b16 %v178, %v178
    %v182 = vpack.c.b16 %v179, %v179
    %v183 = vpack.c.b16 %v180, %v180
    %184 = vrot.lane.b32.xlu0 %v181, 3
    %v185 = vpop.permute.xlu0 %184
    %186 = vrot.lane.b32.xlu0 %v182, 3
    %v187 = vpop.permute.xlu0 %186
    %188 = vrot.lane.b32.xlu0 %v183, 3
    %v189 = vpop.permute.xlu0 %188
    %vm190 = vcmask 23552
    %v191 = vsel %vm190, %v185, %v187
    %v192 = vsel %vm190, %v187, %v189
    %v194 = vsel %vm116, %v175, 0
    %v197 = vsel %vm80, %v191, 0
    %v200 = vsel %vm80, %v192, 0
    %202 = vmatprep.subr.bf16.mxu0 %v200
    %203 = vmatpush1.bf16.msra.mxu0 %v197
    %204 = vmatprep.subr.bf16.mxu0 0
    %205 = vmatpush1.bf16.msra.mxu0 0
    %206 = vmatprep.subr.bf16.mxu0 0
    %207 = vmatpush1.bf16.msra.mxu0 0
    %208 = vmatprep.subr.bf16.mxu0 0
    %209 = vmatpush1.bf16.msra.mxu0 0
    %210 = vmatprep.subr.bf16.mxu0 0
    %211 = vmatpush1.bf16.msra.mxu0 0
    %212 = vmatprep.subr.bf16.mxu0 0
    %213 = vmatpush1.bf16.msra.mxu0 0
    %214 = vmatprep.subr.bf16.mxu0 0
    %215 = vmatpush1.bf16.msra.mxu0 0
    %216 = vmatprep.subr.bf16.mxu0 0
    %217 = vmatpush1.bf16.msra.mxu0 0
    %218 = vmatprep.subr.bf16.mxu0 0
    %219 = vmatpush1.bf16.msra.mxu0 0
    %220 = vmatprep.subr.bf16.mxu0 0
    %221 = vmatpush1.bf16.msra.mxu0 0
    %222 = vmatprep.subr.bf16.mxu0 0
    %223 = vmatpush1.bf16.msra.mxu0 0
    %224 = vmatprep.subr.bf16.mxu0 0
    %225 = vmatpush1.bf16.msra.mxu0 0
    %226 = vmatprep.subr.bf16.mxu0 0
    %227 = vmatpush1.bf16.msra.mxu0 0
    %228 = vmatprep.subr.bf16.mxu0 0
    %229 = vmatpush1.bf16.msra.mxu0 0
    %230 = vmatprep.subr.bf16.mxu0 0
    %231 = vmatpush1.bf16.msra.mxu0 0
    %232 = vmatprep.subr.bf16.mxu0 0
    %233 = vmatpush1.bf16.msra.mxu0 0
    %234 = vmatprep.mubr.bf16.mxu0 0
    %235 = vmatmul.mubr.bf16.gmra.mrb[0].mxu0 %v194
    %v236 = vpop.f32.mrb[0].mxu0
    %v237 = vadd.f32 0.0, %v236
    %v238 = vpop.f32.mrb[0].mxu0
    %v239 = vadd.f32 0.0, %v238
    %v240 = vpop.f32.mrb[0].mxu0
    %v241 = vpop.f32.mrb[0].mxu0
    %242 = vdwg.mxu0
    %v243 = vld [vmem:[#allocation4] sm:$0xff]
    %v246 = vcombine.low %v237, %v239
    %v248 = vadd.f32 %v243, %v246
    %249 = vst [vmem:[#allocation4] sm:$0xff] %v248
    %v250 = vld [vmem:[#allocation2] sm:$0xff]
    %v251 = vld [vmem:[#allocation2 + $0x8] sm:$0xf]
    %s252 = scalar_lea.vmem %s5, 4
    %v253 = vld [vmem:[%s252] sm:$0x3]
    %v256 = vunpack.c.l.b16 %v250
    %v257 = vunpack.c.h.b16 %v250
    %v258 = vunpack.c.l.b16 %v251
    %v259 = vpack.c.b16 %v256, %v256
    %v260 = vpack.c.b16 %v257, %v257
    %v261 = vpack.c.b16 %v258, %v258
    %262 = vrot.lane.b32.xlu0 %v259, 2
    %v263 = vpop.permute.xlu0 %262
    %264 = vrot.lane.b32.xlu0 %v260, 2
    %v265 = vpop.permute.xlu0 %264
    %266 = vrot.lane.b32.xlu0 %v261, 2
    %v267 = vpop.permute.xlu0 %266
    %vm268 = vcmask 15360
    %v269 = vsel %vm268, %v263, %v265
    %v270 = vsel %vm268, %v265, %v267
    %v272 = vsel %vm116, %v253, 0
    %v275 = vsel %vm80, %v269, 0
    %v278 = vsel %vm80, %v270, 0
    %280 = vmatprep.subr.bf16.mxu0 %v278
    %281 = vmatpush1.bf16.msra.mxu0 %v275
    %282 = vmatprep.subr.bf16.mxu0 0
    %283 = vmatpush1.bf16.msra.mxu0 0
    %284 = vmatprep.subr.bf16.mxu0 0
    %285 = vmatpush1.bf16.msra.mxu0 0
    %286 = vmatprep.subr.bf16.mxu0 0
    %287 = vmatpush1.bf16.msra.mxu0 0
    %288 = vmatprep.subr.bf16.mxu0 0
    %289 = vmatpush1.bf16.msra.mxu0 0
    %290 = vmatprep.subr.bf16.mxu0 0
    %291 = vmatpush1.bf16.msra.mxu0 0
    %292 = vmatprep.subr.bf16.mxu0 0
    %293 = vmatpush1.bf16.msra.mxu0 0
    %294 = vmatprep.subr.bf16.mxu0 0
    %295 = vmatpush1.bf16.msra.mxu0 0
    %296 = vmatprep.subr.bf16.mxu0 0
    %297 = vmatpush1.bf16.msra.mxu0 0
    %298 = vmatprep.subr.bf16.mxu0 0
    %299 = vmatpush1.bf16.msra.mxu0 0
    %300 = vmatprep.subr.bf16.mxu0 0
    %301 = vmatpush1.bf16.msra.mxu0 0
    %302 = vmatprep.subr.bf16.mxu0 0
    %303 = vmatpush1.bf16.msra.mxu0 0
    %304 = vmatprep.subr.bf16.mxu0 0
    %305 = vmatpush1.bf16.msra.mxu0 0
    %306 = vmatprep.subr.bf16.mxu0 0
    %307 = vmatpush1.bf16.msra.mxu0 0
    %308 = vmatprep.subr.bf16.mxu0 0
    %309 = vmatpush1.bf16.msra.mxu0 0
    %310 = vmatprep.subr.bf16.mxu0 0
    %311 = vmatpush1.bf16.msra.mxu0 0
    %312 = vmatprep.mubr.bf16.mxu0 0
    %313 = vmatmul.mubr.bf16.gmra.mrb[0].mxu0 %v272
    %v314 = vpop.f32.mrb[0].mxu0
    %v315 = vadd.f32 0.0, %v314
    %v316 = vpop.f32.mrb[0].mxu0
    %v317 = vadd.f32 0.0, %v316
    %v318 = vpop.f32.mrb[0].mxu0
    %v319 = vpop.f32.mrb[0].mxu0
    %320 = vdwg.mxu0
    %v321 = vld [vmem:[#allocation4] sm:$0xff]
    %v324 = vcombine.low %v315, %v317
    %v326 = vadd.f32 %v321, %v324
    %327 = vst [vmem:[#allocation4] sm:$0xff] %v326
    %v328 = vld [vmem:[#allocation2] sm:$0xff]
    %v329 = vld [vmem:[#allocation2 + $0x8] sm:$0xf]
    %s330 = scalar_lea.vmem %s5, 6
    %v331 = vld [vmem:[%s330] sm:$0x3]
    %v334 = vunpack.c.l.b16 %v328
    %v335 = vunpack.c.h.b16 %v328
    %v336 = vunpack.c.l.b16 %v329
    %v337 = vpack.c.b16 %v334, %v334
    %v338 = vpack.c.b16 %v335, %v335
    %v339 = vpack.c.b16 %v336, %v336
    %340 = vrot.lane.b32.xlu0 %v337, 1
    %v341 = vpop.permute.xlu0 %340
    %342 = vrot.lane.b32.xlu0 %v338, 1
    %v343 = vpop.permute.xlu0 %342
    %344 = vrot.lane.b32.xlu0 %v339, 1
    %v345 = vpop.permute.xlu0 %344
    %vm346 = vcmask 7168
    %v347 = vsel %vm346, %v341, %v343
    %v348 = vsel %vm346, %v343, %v345
    %v350 = vsel %vm116, %v331, 0
    %v353 = vsel %vm80, %v347, 0
    %v356 = vsel %vm80, %v348, 0
    %358 = vmatprep.subr.bf16.mxu0 %v356
    %359 = vmatpush1.bf16.msra.mxu0 %v353
    %360 = vmatprep.subr.bf16.mxu0 0
    %361 = vmatpush1.bf16.msra.mxu0 0
    %362 = vmatprep.subr.bf16.mxu0 0
    %363 = vmatpush1.bf16.msra.mxu0 0
    %364 = vmatprep.subr.bf16.mxu0 0
    %365 = vmatpush1.bf16.msra.mxu0 0
    %366 = vmatprep.subr.bf16.mxu0 0
    %367 = vmatpush1.bf16.msra.mxu0 0
    %368 = vmatprep.subr.bf16.mxu0 0
    %369 = vmatpush1.bf16.msra.mxu0 0
    %370 = vmatprep.subr.bf16.mxu0 0
    %371 = vmatpush1.bf16.msra.mxu0 0
    %372 = vmatprep.subr.bf16.mxu0 0
    %373 = vmatpush1.bf16.msra.mxu0 0
    %374 = vmatprep.subr.bf16.mxu0 0
    %375 = vmatpush1.bf16.msra.mxu0 0
    %376 = vmatprep.subr.bf16.mxu0 0
    %377 = vmatpush1.bf16.msra.mxu0 0
    %378 = vmatprep.subr.bf16.mxu0 0
    %379 = vmatpush1.bf16.msra.mxu0 0
    %380 = vmatprep.subr.bf16.mxu0 0
    %381 = vmatpush1.bf16.msra.mxu0 0
    %382 = vmatprep.subr.bf16.mxu0 0
    %383 = vmatpush1.bf16.msra.mxu0 0
    %384 = vmatprep.subr.bf16.mxu0 0
    %385 = vmatpush1.bf16.msra.mxu0 0
    %386 = vmatprep.subr.bf16.mxu0 0
    %387 = vmatpush1.bf16.msra.mxu0 0
    %388 = vmatprep.subr.bf16.mxu0 0
    %389 = vmatpush1.bf16.msra.mxu0 0
    %390 = vmatprep.mubr.bf16.mxu0 0
    %391 = vmatmul.mubr.bf16.gmra.mrb[0].mxu0 %v350
    %v392 = vpop.f32.mrb[0].mxu0
    %v393 = vadd.f32 0.0, %v392
    %v394 = vpop.f32.mrb[0].mxu0
    %v395 = vadd.f32 0.0, %v394
    %v396 = vpop.f32.mrb[0].mxu0
    %v397 = vpop.f32.mrb[0].mxu0
    %398 = vdwg.mxu0
    %v399 = vld [vmem:[#allocation4] sm:$0xff]
    %v402 = vcombine.low %v393, %v395
    %v404 = vadd.f32 %v399, %v402
    %405 = vst [vmem:[#allocation4] sm:$0xff] %v404
    %v406 = vld [vmem:[#allocation2 + $0x4] sm:$0xff]
    %s407 = scalar_lea.vmem %s5, 8
    %v408 = vld [vmem:[%s407] sm:$0x3]
    %v410 = vunpack.c.l.b16 %v406
    %v411 = vunpack.c.h.b16 %v406
    %v412 = vpack.c.b16 %v410, %v410
    %v413 = vpack.c.b16 %v411, %v411
    %v415 = vsel %vm116, %v408, 0
    %v418 = vsel %vm80, %v412, 0
    %v421 = vsel %vm80, %v413, 0
    %423 = vmatprep.subr.bf16.mxu0 %v421
    %424 = vmatpush1.bf16.msra.mxu0 %v418
    %425 = vmatprep.subr.bf16.mxu0 0
    %426 = vmatpush1.bf16.msra.mxu0 0
    %427 = vmatprep.subr.bf16.mxu0 0
    %428 = vmatpush1.bf16.msra.mxu0 0
    %429 = vmatprep.subr.bf16.mxu0 0
    %430 = vmatpush1.bf16.msra.mxu0 0
    %431 = vmatprep.subr.bf16.mxu0 0
    %432 = vmatpush1.bf16.msra.mxu0 0
    %433 = vmatprep.subr.bf16.mxu0 0
    %434 = vmatpush1.bf16.msra.mxu0 0
    %435 = vmatprep.subr.bf16.mxu0 0
    %436 = vmatpush1.bf16.msra.mxu0 0
    %437 = vmatprep.subr.bf16.mxu0 0
    %438 = vmatpush1.bf16.msra.mxu0 0
    %439 = vmatprep.subr.bf16.mxu0 0
    %440 = vmatpush1.bf16.msra.mxu0 0
    %441 = vmatprep.subr.bf16.mxu0 0
    %442 = vmatpush1.bf16.msra.mxu0 0
    %443 = vmatprep.subr.bf16.mxu0 0
    %444 = vmatpush1.bf16.msra.mxu0 0
    %445 = vmatprep.subr.bf16.mxu0 0
    %446 = vmatpush1.bf16.msra.mxu0 0
    %447 = vmatprep.subr.bf16.mxu0 0
    %448 = vmatpush1.bf16.msra.mxu0 0
    %449 = vmatprep.subr.bf16.mxu0 0
    %450 = vmatpush1.bf16.msra.mxu0 0
    %451 = vmatprep.subr.bf16.mxu0 0
    %452 = vmatpush1.bf16.msra.mxu0 0
    %453 = vmatprep.subr.bf16.mxu0 0
    %454 = vmatpush1.bf16.msra.mxu0 0
    %455 = vmatprep.mubr.bf16.mxu0 0
    %456 = vmatmul.mubr.bf16.gmra.mrb[0].mxu0 %v415
    %v457 = vpop.f32.mrb[0].mxu0
    %v458 = vadd.f32 0.0, %v457
    %v459 = vpop.f32.mrb[0].mxu0
    %v460 = vadd.f32 0.0, %v459
    %v461 = vpop.f32.mrb[0].mxu0
    %v462 = vpop.f32.mrb[0].mxu0
    %463 = vdwg.mxu0
    %v464 = vld [vmem:[#allocation4] sm:$0xff]
    %v467 = vcombine.low %v458, %v460
    %v469 = vadd.f32 %v464, %v467
    %470 = vst [vmem:[#allocation4] sm:$0xff] %v469
    %v471 = vld [vmem:[#allocation2 + $0x4] sm:$0xff]
    %v472 = vld [vmem:[#allocation2 + $0xc] sm:$0xf]
    %s473 = scalar_lea.vmem %s5, 10
    %v474 = vld [vmem:[%s473] sm:$0x3]
    %v477 = vunpack.c.l.b16 %v471
    %v478 = vunpack.c.h.b16 %v471
    %v479 = vunpack.c.l.b16 %v472
    %v480 = vpack.c.b16 %v477, %v477
    %v481 = vpack.c.b16 %v478, %v478
    %v482 = vpack.c.b16 %v479, %v479
    %483 = vrot.lane.b32.xlu0 %v480, 127
    %v484 = vpop.permute.xlu0 %483
    %485 = vrot.lane.b32.xlu0 %v481, 127
    %v486 = vpop.permute.xlu0 %485
    %487 = vrot.lane.b32.xlu0 %v482, 127
    %v488 = vpop.permute.xlu0 %487
    %vm489 = vcmask 1039360
    %v490 = vsel %vm489, %v484, %v486
    %v491 = vsel %vm489, %v486, %v488
    %v493 = vsel %vm116, %v474, 0
    %v496 = vsel %vm80, %v490, 0
    %v499 = vsel %vm80, %v491, 0
    %501 = vmatprep.subr.bf16.mxu0 %v499
    %502 = vmatpush1.bf16.msra.mxu0 %v496
    %503 = vmatprep.subr.bf16.mxu0 0
    %504 = vmatpush1.bf16.msra.mxu0 0
    %505 = vmatprep.subr.bf16.mxu0 0
    %506 = vmatpush1.bf16.msra.mxu0 0
    %507 = vmatprep.subr.bf16.mxu0 0
    %508 = vmatpush1.bf16.msra.mxu0 0
    %509 = vmatprep.subr.bf16.mxu0 0
    %510 = vmatpush1.bf16.msra.mxu0 0
    %511 = vmatprep.subr.bf16.mxu0 0
    %512 = vmatpush1.bf16.msra.mxu0 0
    %513 = vmatprep.subr.bf16.mxu0 0
    %514 = vmatpush1.bf16.msra.mxu0 0
    %515 = vmatprep.subr.bf16.mxu0 0
    %516 = vmatpush1.bf16.msra.mxu0 0
    %517 = vmatprep.subr.bf16.mxu0 0
    %518 = vmatpush1.bf16.msra.mxu0 0
    %519 = vmatprep.subr.bf16.mxu0 0
    %520 = vmatpush1.bf16.msra.mxu0 0
    %521 = vmatprep.subr.bf16.mxu0 0
    %522 = vmatpush1.bf16.msra.mxu0 0
    %523 = vmatprep.subr.bf16.mxu0 0
    %524 = vmatpush1.bf16.msra.mxu0 0
    %525 = vmatprep.subr.bf16.mxu0 0
    %526 = vmatpush1.bf16.msra.mxu0 0
    %527 = vmatprep.subr.bf16.mxu0 0
    %528 = vmatpush1.bf16.msra.mxu0 0
    %529 = vmatprep.subr.bf16.mxu0 0
    %530 = vmatpush1.bf16.msra.mxu0 0
    %531 = vmatprep.subr.bf16.mxu0 0
    %532 = vmatpush1.bf16.msra.mxu0 0
    %533 = vmatprep.mubr.bf16.mxu0 0
    %534 = vmatmul.mubr.bf16.gmra.mrb[0].mxu0 %v493
    %v535 = vpop.f32.mrb[0].mxu0
    %v536 = vadd.f32 0.0, %v535
    %v537 = vpop.f32.mrb[0].mxu0
    %v538 = vadd.f32 0.0, %v537
    %v539 = vpop.f32.mrb[0].mxu0
    %v540 = vpop.f32.mrb[0].mxu0
    %541 = vdwg.mxu0
    %v542 = vld [vmem:[#allocation4] sm:$0xff]
    %v545 = vcombine.low %v536, %v538
    %v547 = vadd.f32 %v542, %v545
    %548 = vst [vmem:[#allocation4] sm:$0xff] %v547
    %v549 = vld [vmem:[#allocation2 + $0x4] sm:$0xff]
    %v550 = vld [vmem:[#allocation2 + $0xc] sm:$0xf]
    %s551 = scalar_lea.vmem %s5, 12
    %v552 = vld [vmem:[%s551] sm:$0x3]
    %v555 = vunpack.c.l.b16 %v549
    %v556 = vunpack.c.h.b16 %v549
    %v557 = vunpack.c.l.b16 %v550
    %v558 = vpack.c.b16 %v555, %v555
    %v559 = vpack.c.b16 %v556, %v556
    %v560 = vpack.c.b16 %v557, %v557
    %561 = vrot.lane.b32.xlu0 %v558, 126
    %v562 = vpop.permute.xlu0 %561
    %563 = vrot.lane.b32.xlu0 %v559, 126
    %v564 = vpop.permute.xlu0 %563
    %565 = vrot.lane.b32.xlu0 %v560, 126
    %v566 = vpop.permute.xlu0 %565
    %vm567 = vcmask 1031168
    %v568 = vsel %vm567, %v562, %v564
    %v569 = vsel %vm567, %v564, %v566
    %v571 = vsel %vm116, %v552, 0
    %v574 = vsel %vm80, %v568, 0
    %v577 = vsel %vm80, %v569, 0
    %579 = vmatprep.subr.bf16.mxu0 %v577
    %580 = vmatpush1.bf16.msra.mxu0 %v574
    %581 = vmatprep.subr.bf16.mxu0 0
    %582 = vmatpush1.bf16.msra.mxu0 0
    %583 = vmatprep.subr.bf16.mxu0 0
    %584 = vmatpush1.bf16.msra.mxu0 0
    %585 = vmatprep.subr.bf16.mxu0 0
    %586 = vmatpush1.bf16.msra.mxu0 0
    %587 = vmatprep.subr.bf16.mxu0 0
    %588 = vmatpush1.bf16.msra.mxu0 0
    %589 = vmatprep.subr.bf16.mxu0 0
    %590 = vmatpush1.bf16.msra.mxu0 0
    %591 = vmatprep.subr.bf16.mxu0 0
    %592 = vmatpush1.bf16.msra.mxu0 0
    %593 = vmatprep.subr.bf16.mxu0 0
    %594 = vmatpush1.bf16.msra.mxu0 0
    %595 = vmatprep.subr.bf16.mxu0 0
    %596 = vmatpush1.bf16.msra.mxu0 0
    %597 = vmatprep.subr.bf16.mxu0 0
    %598 = vmatpush1.bf16.msra.mxu0 0
    %599 = vmatprep.subr.bf16.mxu0 0
    %600 = vmatpush1.bf16.msra.mxu0 0
    %601 = vmatprep.subr.bf16.mxu0 0
    %602 = vmatpush1.bf16.msra.mxu0 0
    %603 = vmatprep.subr.bf16.mxu0 0
    %604 = vmatpush1.bf16.msra.mxu0 0
    %605 = vmatprep.subr.bf16.mxu0 0
    %606 = vmatpush1.bf16.msra.mxu0 0
    %607 = vmatprep.subr.bf16.mxu0 0
    %608 = vmatpush1.bf16.msra.mxu0 0
    %609 = vmatprep.subr.bf16.mxu0 0
    %610 = vmatpush1.bf16.msra.mxu0 0
    %611 = vmatprep.mubr.bf16.mxu0 0
    %612 = vmatmul.mubr.bf16.gmra.mrb[0].mxu0 %v571
    %v613 = vpop.f32.mrb[0].mxu0
    %v614 = vadd.f32 0.0, %v613
    %v615 = vpop.f32.mrb[0].mxu0
    %v616 = vadd.f32 0.0, %v615
    %v617 = vpop.f32.mrb[0].mxu0
    %v618 = vpop.f32.mrb[0].mxu0
    %619 = vdwg.mxu0
    %v620 = vld [vmem:[#allocation4] sm:$0xff]
    %v623 = vcombine.low %v614, %v616
    %v625 = vadd.f32 %v620, %v623
    %626 = vst [vmem:[#allocation4] sm:$0xff] %v625
    %v627 = vld [vmem:[#allocation2 + $0x4] sm:$0xff]
    %v628 = vld [vmem:[#allocation2 + $0xc] sm:$0xf]
    %s629 = scalar_lea.vmem %s5, 14
    %v630 = vld [vmem:[%s629] sm:$0x3]
    %v633 = vunpack.c.l.b16 %v627
    %v634 = vunpack.c.h.b16 %v627
    %v635 = vunpack.c.l.b16 %v628
    %v636 = vpack.c.b16 %v633, %v633
    %v637 = vpack.c.b16 %v634, %v634
    %v638 = vpack.c.b16 %v635, %v635
    %639 = vrot.lane.b32.xlu0 %v636, 125
    %v640 = vpop.permute.xlu0 %639
    %641 = vrot.lane.b32.xlu0 %v637, 125
    %v642 = vpop.permute.xlu0 %641
    %643 = vrot.lane.b32.xlu0 %v638, 125
    %v644 = vpop.permute.xlu0 %643
    %vm645 = vcmask 1022976
    %v646 = vsel %vm645, %v640, %v642
    %v647 = vsel %vm645, %v642, %v644
    %v649 = vsel %vm116, %v630, 0
    %v652 = vsel %vm80, %v646, 0
    %v655 = vsel %vm80, %v647, 0
    %657 = vmatprep.subr.bf16.mxu0 %v655
    %658 = vmatpush1.bf16.msra.mxu0 %v652
    %659 = vmatprep.subr.bf16.mxu0 0
    %660 = vmatpush1.bf16.msra.mxu0 0
    %661 = vmatprep.subr.bf16.mxu0 0
    %662 = vmatpush1.bf16.msra.mxu0 0
    %663 = vmatprep.subr.bf16.mxu0 0
    %664 = vmatpush1.bf16.msra.mxu0 0
    %665 = vmatprep.subr.bf16.mxu0 0
    %666 = vmatpush1.bf16.msra.mxu0 0
    %667 = vmatprep.subr.bf16.mxu0 0
    %668 = vmatpush1.bf16.msra.mxu0 0
    %669 = vmatprep.subr.bf16.mxu0 0
    %670 = vmatpush1.bf16.msra.mxu0 0
    %671 = vmatprep.subr.bf16.mxu0 0
    %672 = vmatpush1.bf16.msra.mxu0 0
    %673 = vmatprep.subr.bf16.mxu0 0
    %674 = vmatpush1.bf16.msra.mxu0 0
    %675 = vmatprep.subr.bf16.mxu0 0
    %676 = vmatpush1.bf16.msra.mxu0 0
    %677 = vmatprep.subr.bf16.mxu0 0
    %678 = vmatpush1.bf16.msra.mxu0 0
    %679 = vmatprep.subr.bf16.mxu0 0
    %680 = vmatpush1.bf16.msra.mxu0 0
    %681 = vmatprep.subr.bf16.mxu0 0
    %682 = vmatpush1.bf16.msra.mxu0 0
    %683 = vmatprep.subr.bf16.mxu0 0
    %684 = vmatpush1.bf16.msra.mxu0 0
    %685 = vmatprep.subr.bf16.mxu0 0
    %686 = vmatpush1.bf16.msra.mxu0 0
    %687 = vmatprep.subr.bf16.mxu0 0
    %688 = vmatpush1.bf16.msra.mxu0 0
    %689 = vmatprep.mubr.bf16.mxu0 0
    %690 = vmatmul.mubr.bf16.gmra.mrb[0].mxu0 %v649
    %v691 = vpop.f32.mrb[0].mxu0
    %v692 = vadd.f32 0.0, %v691
    %v693 = vpop.f32.mrb[0].mxu0
    %v694 = vadd.f32 0.0, %v693
    %v695 = vpop.f32.mrb[0].mxu0
    %v696 = vpop.f32.mrb[0].mxu0
    %697 = vdwg.mxu0
    %v698 = vld [vmem:[#allocation4] sm:$0xff]
    %v701 = vcombine.low %v692, %v694
    %v703 = vadd.f32 %v698, %v701
    %704 = vst [vmem:[#allocation4] sm:$0xff] %v703
    %v705 = vld [vmem:[#allocation2 + $0x4] sm:$0xff]
    %v706 = vld [vmem:[#allocation2 + $0xc] sm:$0xf]
    %s707 = scalar_lea.vmem %s5, 16
    %v708 = vld [vmem:[%s707] sm:$0x3]
    %v711 = vunpack.c.l.b16 %v705
    %v712 = vunpack.c.h.b16 %v705
    %v713 = vunpack.c.l.b16 %v706
    %v714 = vpack.c.b16 %v711, %v711
    %v715 = vpack.c.b16 %v712, %v712
    %v716 = vpack.c.b16 %v713, %v713
    %717 = vrot.lane.b32.xlu0 %v714, 124
    %v718 = vpop.permute.xlu0 %717
    %719 = vrot.lane.b32.xlu0 %v715, 124
    %v720 = vpop.permute.xlu0 %719
    %721 = vrot.lane.b32.xlu0 %v716, 124
    %v722 = vpop.permute.xlu0 %721
    %vm723 = vcmask 1014784
    %v724 = vsel %vm723, %v718, %v720
    %v725 = vsel %vm723, %v720, %v722
    %v727 = vsel %vm116, %v708, 0
    %v730 = vsel %vm80, %v724, 0
    %v733 = vsel %vm80, %v725, 0
    %735 = vmatprep.subr.bf16.mxu0 %v733
    %736 = vmatpush1.bf16.msra.mxu0 %v730
    %737 = vmatprep.subr.bf16.mxu0 0
    %738 = vmatpush1.bf16.msra.mxu0 0
    %739 = vmatprep.subr.bf16.mxu0 0
    %740 = vmatpush1.bf16.msra.mxu0 0
    %741 = vmatprep.subr.bf16.mxu0 0
    %742 = vmatpush1.bf16.msra.mxu0 0
    %743 = vmatprep.subr.bf16.mxu0 0
    %744 = vmatpush1.bf16.msra.mxu0 0
    %745 = vmatprep.subr.bf16.mxu0 0
    %746 = vmatpush1.bf16.msra.mxu0 0
    %747 = vmatprep.subr.bf16.mxu0 0
    %748 = vmatpush1.bf16.msra.mxu0 0
    %749 = vmatprep.subr.bf16.mxu0 0
    %750 = vmatpush1.bf16.msra.mxu0 0
    %751 = vmatprep.subr.bf16.mxu0 0
    %752 = vmatpush1.bf16.msra.mxu0 0
    %753 = vmatprep.subr.bf16.mxu0 0
    %754 = vmatpush1.bf16.msra.mxu0 0
    %755 = vmatprep.subr.bf16.mxu0 0
    %756 = vmatpush1.bf16.msra.mxu0 0
    %757 = vmatprep.subr.bf16.mxu0 0
    %758 = vmatpush1.bf16.msra.mxu0 0
    %759 = vmatprep.subr.bf16.mxu0 0
    %760 = vmatpush1.bf16.msra.mxu0 0
    %761 = vmatprep.subr.bf16.mxu0 0
    %762 = vmatpush1.bf16.msra.mxu0 0
    %763 = vmatprep.subr.bf16.mxu0 0
    %764 = vmatpush1.bf16.msra.mxu0 0
    %765 = vmatprep.subr.bf16.mxu0 0
    %766 = vmatpush1.bf16.msra.mxu0 0
    %767 = vmatprep.mubr.bf16.mxu0 0
    %768 = vmatmul.mubr.bf16.gmra.mrb[0].mxu0 %v727
    %v769 = vpop.f32.mrb[0].mxu0
    %v770 = vadd.f32 0.0, %v769
    %v771 = vpop.f32.mrb[0].mxu0
    %v772 = vadd.f32 0.0, %v771
    %v773 = vpop.f32.mrb[0].mxu0
    %v774 = vpop.f32.mrb[0].mxu0
    %775 = vdwg.mxu0
    %v776 = vld [vmem:[#allocation4] sm:$0xff]
    %v779 = vcombine.low %v770, %v772
    %v781 = vadd.f32 %v776, %v779
    %782 = vst [vmem:[#allocation4] sm:$0xff] %v781
    %783 = vst [vmem:[#allocation3] sm:$0x3] 0
    %784 = vst [vmem:[#allocation3 + $0x6] sm:$0x3] 0
    %v785 = vld [vmem:[#allocation4] sm:$0xff]
    %v787 = vlaneseq
    %v788 = vshrl.u32 %v787, 7
    %v789 = vsub.s32 0, %v788
    %v790 = vrot.slane %v43, %v789
    %v791 = vlaneseq
    %v792 = vshrl.u32 %v791, 7
    %v793 = vsub.s32 1, %v792
    %v794 = vrot.slane %v43, %v793
    %v795 = vcombine.low %v790, %v794
    %v797 = vmul.f32 %v785, %v795
    %v799 = vcombine.high %v797, %v797
    %v801 = vsel %vm80, %v797, 0.0
    %v802 = vsel %vm80, %v799, 0.0
    %v803 = vadd.f32 %v801, %v802
    %804 = vadd.xlane.f32.xlu0 %v803
    %v805 = vpop.xlane.xlu0 %804
    %v806 = vmul.f32 %v805, 0.027777778
    %v807 = vmul.f32 %v785, %v785
    %v808 = vmul.f32 %v807, %v795
    %v810 = vcombine.high %v808, %v808
    %v812 = vsel %vm80, %v808, 0.0
    %v813 = vsel %vm80, %v810, 0.0
    %v814 = vadd.f32 %v812, %v813
    %815 = vadd.xlane.f32.xlu0 %v814
    %v816 = vpop.xlane.xlu0 %815
    %v817 = vmul.f32 %v816, 0.027777778
    %v818 = vmul.f32 %v806, %v806
    %v819 = vsub.f32 %v817, %v818
    %v820 = vadd.f32 %v819, 1e-05
    %v821 = vrsqrt.pop %v820
    %v822 = vld [vmem:[%s6] sm:$0xf]
    %v823 = vmul.f32 %v821, %v822
    %v826 = vunpack.c.l.s4 839922192
    %v827 = vunpack.c.0.s8 %v826
    %v828 = vlaneseq
    %v829 = vshrl.u32 %v828, 7
    %v830 = vsub.s32 %v827, %v829
    %v831 = vrot.slane %v806, %v830
    %v833 = vsub.f32 %v785, %v831
    %835 = vset.pattern.permute.xlu0 0
    %836 = vperm.xlu0 %835, %v823
    %v837 = vpop.permute.xlu0 %836
    %v839 = vunpack.c.l.s4 839922192
    %v840 = vunpack.c.0.s8 %v839
    %v841 = vlaneseq
    %v842 = vshrl.u32 %v841, 7
    %v843 = vsub.s32 %v840, %v842
    %v844 = vrot.slane %v837, %v843
    %v846 = vmul.f32 %v833, %v844
    %v847 = vld [vmem:[%s7] sm:$0xf]
    %849 = vset.pattern.permute.xlu0 0
    %850 = vperm.xlu0 %849, %v847
    %v851 = vpop.permute.xlu0 %850
    %v853 = vunpack.c.l.s4 839922192
    %v854 = vunpack.c.0.s8 %v853
    %v855 = vlaneseq
    %v856 = vshrl.u32 %v855, 7
    %v857 = vsub.s32 %v854, %v856
    %v858 = vrot.slane %v851, %v857
    %v860 = vadd.f32 %v846, %v858
    %v861 = vmax.f32 %v860, 0.0
    %v862 = vmul.f32 %v861, %v795
    %v864 = vcombine.high %v862, %v862
    %v866 = vpack.c.bf16 %v862, %v862
    %v867 = vpack.c.bf16 %v864, %v864
    %v870 = vcombine.low %v866, %v867
    %v872 = vunpack.c.l.s4 1983009808
    %v873 = vunpack.c.0.s8 %v872
    %v874 = vlaneseq
    %v875 = vshrl.u32 %v874, 7
    %v876 = vsub.s32 %v873, %v875
    %v877 = vrot.slane %v870, %v876
    %879 = vst [vmem:[#allocation3 + $0x2] sm:$0xf] %v877
    %v880 = vld [vmem:[#allocation3] sm:$0x3f]
    %v881 = vld [vmem:[%s8] sm:$0x3]
    %v883 = vcombine.high %v880, %v880
    %v885 = vunpack.c.l.s4 1983009808
    %v886 = vunpack.c.0.s8 %v885
    %v887 = vlaneseq
    %v888 = vshrl.u32 %v887, 7
    %v889 = vsub.s32 %v886, %v888
    %v890 = vrot.slane %v880, %v889
    %v892 = vunpack.c.l.s4 1983009808
    %v893 = vunpack.c.0.s8 %v892
    %v894 = vlaneseq
    %v895 = vshrl.u32 %v894, 7
    %v896 = vsub.s32 %v893, %v895
    %v897 = vrot.slane %v883, %v896
    %v898 = vcombine.high %v890, %v890
    %899 = vrot.lane.b32.xlu0 %v890, 4
    %v900 = vpop.permute.xlu0 %899
    %901 = vrot.lane.b32.xlu0 %v898, 4
    %v902 = vpop.permute.xlu0 %901
    %903 = vrot.lane.b32.xlu0 %v897, 4
    %v904 = vpop.permute.xlu0 %903
    %v905 = vsel %vm113, %v900, %v902
    %v906 = vsel %vm113, %v902, %v904
    %vm907 = vcmask 31744
    %v909 = vsel %vm907, %v881, 0
    %vm911 = vcmask 1041408
    %v913 = vsel %vm911, %v905, 0
    %v916 = vsel %vm911, %v906, 0
    %918 = vmatprep.subr.bf16.mxu0 %v916
    %919 = vmatpush1.bf16.msra.mxu0 %v913
    %920 = vmatprep.subr.bf16.mxu0 0
    %921 = vmatpush1.bf16.msra.mxu0 0
    %922 = vmatprep.subr.bf16.mxu0 0
    %923 = vmatpush1.bf16.msra.mxu0 0
    %924 = vmatprep.subr.bf16.mxu0 0
    %925 = vmatpush1.bf16.msra.mxu0 0
    %926 = vmatprep.subr.bf16.mxu0 0
    %927 = vmatpush1.bf16.msra.mxu0 0
    %928 = vmatprep.subr.bf16.mxu0 0
    %929 = vmatpush1.bf16.msra.mxu0 0
    %930 = vmatprep.subr.bf16.mxu0 0
    %931 = vmatpush1.bf16.msra.mxu0 0
    %932 = vmatprep.subr.bf16.mxu0 0
    %933 = vmatpush1.bf16.msra.mxu0 0
    %934 = vmatprep.subr.bf16.mxu0 0
    %935 = vmatpush1.bf16.msra.mxu0 0
    %936 = vmatprep.subr.bf16.mxu0 0
    %937 = vmatpush1.bf16.msra.mxu0 0
    %938 = vmatprep.subr.bf16.mxu0 0
    %939 = vmatpush1.bf16.msra.mxu0 0
    %940 = vmatprep.subr.bf16.mxu0 0
    %941 = vmatpush1.bf16.msra.mxu0 0
    %942 = vmatprep.subr.bf16.mxu0 0
    %943 = vmatpush1.bf16.msra.mxu0 0
    %944 = vmatprep.subr.bf16.mxu0 0
    %945 = vmatpush1.bf16.msra.mxu0 0
    %946 = vmatprep.subr.bf16.mxu0 0
    %947 = vmatpush1.bf16.msra.mxu0 0
    %948 = vmatprep.subr.bf16.mxu0 0
    %949 = vmatpush1.bf16.msra.mxu0 0
    %950 = vmatprep.mubr.bf16.mxu0 0
    %951 = vmatmul.mubr.bf16.gmra.mrb[0].mxu0 %v909
    %v952 = vpop.f32.mrb[0].mxu0
    %v953 = vadd.f32 0.0, %v952
    %v954 = vpop.f32.mrb[0].mxu0
    %v955 = vadd.f32 0.0, %v954
    %v956 = vpop.f32.mrb[0].mxu0
    %v957 = vpop.f32.mrb[0].mxu0
    %958 = vdwg.mxu0
    %v961 = vcombine.low %v953, %v955
    %963 = vst [vmem:[#allocation5] sm:$0xff] %v961
    %v964 = vld [vmem:[#allocation3] sm:$0x3f]
    %s965 = scalar_lea.vmem %s8, 2
    %v966 = vld [vmem:[%s965] sm:$0x3]
    %v968 = vcombine.high %v964, %v964
    %v970 = vunpack.c.l.s4 1983009808
    %v971 = vunpack.c.0.s8 %v970
    %v972 = vlaneseq
    %v973 = vshrl.u32 %v972, 7
    %v974 = vsub.s32 %v971, %v973
    %v975 = vrot.slane %v964, %v974
    %v977 = vunpack.c.l.s4 1983009808
    %v978 = vunpack.c.0.s8 %v977
    %v979 = vlaneseq
    %v980 = vshrl.u32 %v979, 7
    %v981 = vsub.s32 %v978, %v980
    %v982 = vrot.slane %v968, %v981
    %v983 = vcombine.high %v975, %v975
    %984 = vrot.lane.b32.xlu0 %v975, 3
    %v985 = vpop.permute.xlu0 %984
    %986 = vrot.lane.b32.xlu0 %v983, 3
    %v987 = vpop.permute.xlu0 %986
    %988 = vrot.lane.b32.xlu0 %v982, 3
    %v989 = vpop.permute.xlu0 %988
    %v990 = vsel %vm190, %v985, %v987
    %v991 = vsel %vm190, %v987, %v989
    %v993 = vsel %vm907, %v966, 0
    %v996 = vsel %vm911, %v990, 0
    %v999 = vsel %vm911, %v991, 0
    %1001 = vmatprep.subr.bf16.mxu0 %v999
    %1002 = vmatpush1.bf16.msra.mxu0 %v996
    %1003 = vmatprep.subr.bf16.mxu0 0
    %1004 = vmatpush1.bf16.msra.mxu0 0
    %1005 = vmatprep.subr.bf16.mxu0 0
    %1006 = vmatpush1.bf16.msra.mxu0 0
    %1007 = vmatprep.subr.bf16.mxu0 0
    %1008 = vmatpush1.bf16.msra.mxu0 0
    %1009 = vmatprep.subr.bf16.mxu0 0
    %1010 = vmatpush1.bf16.msra.mxu0 0
    %1011 = vmatprep.subr.bf16.mxu0 0
    %1012 = vmatpush1.bf16.msra.mxu0 0
    %1013 = vmatprep.subr.bf16.mxu0 0
    %1014 = vmatpush1.bf16.msra.mxu0 0
    %1015 = vmatprep.subr.bf16.mxu0 0
    %1016 = vmatpush1.bf16.msra.mxu0 0
    %1017 = vmatprep.subr.bf16.mxu0 0
    %1018 = vmatpush1.bf16.msra.mxu0 0
    %1019 = vmatprep.subr.bf16.mxu0 0
    %1020 = vmatpush1.bf16.msra.mxu0 0
    %1021 = vmatprep.subr.bf16.mxu0 0
    %1022 = vmatpush1.bf16.msra.mxu0 0
    %1023 = vmatprep.subr.bf16.mxu0 0
    %1024 = vmatpush1.bf16.msra.mxu0 0
    %1025 = vmatprep.subr.bf16.mxu0 0
    %1026 = vmatpush1.bf16.msra.mxu0 0
    %1027 = vmatprep.subr.bf16.mxu0 0
    %1028 = vmatpush1.bf16.msra.mxu0 0
    %1029 = vmatprep.subr.bf16.mxu0 0
    %1030 = vmatpush1.bf16.msra.mxu0 0
    %1031 = vmatprep.subr.bf16.mxu0 0
    %1032 = vmatpush1.bf16.msra.mxu0 0
    %1033 = vmatprep.mubr.bf16.mxu0 0
    %1034 = vmatmul.mubr.bf16.gmra.mrb[0].mxu0 %v993
    %v1035 = vpop.f32.mrb[0].mxu0
    %v1036 = vadd.f32 0.0, %v1035
    %v1037 = vpop.f32.mrb[0].mxu0
    %v1038 = vadd.f32 0.0, %v1037
    %v1039 = vpop.f32.mrb[0].mxu0
    %v1040 = vpop.f32.mrb[0].mxu0
    %1041 = vdwg.mxu0
    %v1042 = vld [vmem:[#allocation5] sm:$0xff]
    %v1045 = vcombine.low %v1036, %v1038
    %v1047 = vadd.f32 %v1042, %v1045
    %1048 = vst [vmem:[#allocation5] sm:$0xff] %v1047
    %v1049 = vld [vmem:[#allocation3] sm:$0x3f]
    %s1050 = scalar_lea.vmem %s8, 4
    %v1051 = vld [vmem:[%s1050] sm:$0x3]
    %v1053 = vcombine.high %v1049, %v1049
    %v1055 = vunpack.c.l.s4 1983009808
    %v1056 = vunpack.c.0.s8 %v1055
    %v1057 = vlaneseq
    %v1058 = vshrl.u32 %v1057, 7
    %v1059 = vsub.s32 %v1056, %v1058
    %v1060 = vrot.slane %v1049, %v1059
    %v1062 = vunpack.c.l.s4 1983009808
    %v1063 = vunpack.c.0.s8 %v1062
    %v1064 = vlaneseq
    %v1065 = vshrl.u32 %v1064, 7
    %v1066 = vsub.s32 %v1063, %v1065
    %v1067 = vrot.slane %v1053, %v1066
    %v1068 = vcombine.high %v1060, %v1060
    %1069 = vrot.lane.b32.xlu0 %v1060, 2
    %v1070 = vpop.permute.xlu0 %1069
    %1071 = vrot.lane.b32.xlu0 %v1068, 2
    %v1072 = vpop.permute.xlu0 %1071
    %1073 = vrot.lane.b32.xlu0 %v1067, 2
    %v1074 = vpop.permute.xlu0 %1073
    %v1075 = vsel %vm268, %v1070, %v1072
    %v1076 = vsel %vm268, %v1072, %v1074
    %v1078 = vsel %vm907, %v1051, 0
    %v1081 = vsel %vm911, %v1075, 0
    %v1084 = vsel %vm911, %v1076, 0
    %1086 = vmatprep.subr.bf16.mxu0 %v1084
    %1087 = vmatpush1.bf16.msra.mxu0 %v1081
    %1088 = vmatprep.subr.bf16.mxu0 0
    %1089 = vmatpush1.bf16.msra.mxu0 0
    %1090 = vmatprep.subr.bf16.mxu0 0
    %1091 = vmatpush1.bf16.msra.mxu0 0
    %1092 = vmatprep.subr.bf16.mxu0 0
    %1093 = vmatpush1.bf16.msra.mxu0 0
    %1094 = vmatprep.subr.bf16.mxu0 0
    %1095 = vmatpush1.bf16.msra.mxu0 0
    %1096 = vmatprep.subr.bf16.mxu0 0
    %1097 = vmatpush1.bf16.msra.mxu0 0
    %1098 = vmatprep.subr.bf16.mxu0 0
    %1099 = vmatpush1.bf16.msra.mxu0 0
    %1100 = vmatprep.subr.bf16.mxu0 0
    %1101 = vmatpush1.bf16.msra.mxu0 0
    %1102 = vmatprep.subr.bf16.mxu0 0
    %1103 = vmatpush1.bf16.msra.mxu0 0
    %1104 = vmatprep.subr.bf16.mxu0 0
    %1105 = vmatpush1.bf16.msra.mxu0 0
    %1106 = vmatprep.subr.bf16.mxu0 0
    %1107 = vmatpush1.bf16.msra.mxu0 0
    %1108 = vmatprep.subr.bf16.mxu0 0
    %1109 = vmatpush1.bf16.msra.mxu0 0
    %1110 = vmatprep.subr.bf16.mxu0 0
    %1111 = vmatpush1.bf16.msra.mxu0 0
    %1112 = vmatprep.subr.bf16.mxu0 0
    %1113 = vmatpush1.bf16.msra.mxu0 0
    %1114 = vmatprep.subr.bf16.mxu0 0
    %1115 = vmatpush1.bf16.msra.mxu0 0
    %1116 = vmatprep.subr.bf16.mxu0 0
    %1117 = vmatpush1.bf16.msra.mxu0 0
    %1118 = vmatprep.mubr.bf16.mxu0 0
    %1119 = vmatmul.mubr.bf16.gmra.mrb[0].mxu0 %v1078
    %v1120 = vpop.f32.mrb[0].mxu0
    %v1121 = vadd.f32 0.0, %v1120
    %v1122 = vpop.f32.mrb[0].mxu0
    %v1123 = vadd.f32 0.0, %v1122
    %v1124 = vpop.f32.mrb[0].mxu0
    %v1125 = vpop.f32.mrb[0].mxu0
    %1126 = vdwg.mxu0
    %v1127 = vld [vmem:[#allocation5] sm:$0xff]
    %v1130 = vcombine.low %v1121, %v1123
    %v1132 = vadd.f32 %v1127, %v1130
    %1133 = vst [vmem:[#allocation5] sm:$0xff] %v1132
    %v1134 = vld [vmem:[#allocation3] sm:$0x3f]
    %s1135 = scalar_lea.vmem %s8, 6
    %v1136 = vld [vmem:[%s1135] sm:$0x3]
    %v1138 = vcombine.high %v1134, %v1134
    %v1140 = vunpack.c.l.s4 1983009808
    %v1141 = vunpack.c.0.s8 %v1140
    %v1142 = vlaneseq
    %v1143 = vshrl.u32 %v1142, 7
    %v1144 = vsub.s32 %v1141, %v1143
    %v1145 = vrot.slane %v1134, %v1144
    %v1147 = vunpack.c.l.s4 1983009808
    %v1148 = vunpack.c.0.s8 %v1147
    %v1149 = vlaneseq
    %v1150 = vshrl.u32 %v1149, 7
    %v1151 = vsub.s32 %v1148, %v1150
    %v1152 = vrot.slane %v1138, %v1151
    %v1153 = vcombine.high %v1145, %v1145
    %1154 = vrot.lane.b32.xlu0 %v1145, 1
    %v1155 = vpop.permute.xlu0 %1154
    %1156 = vrot.lane.b32.xlu0 %v1153, 1
    %v1157 = vpop.permute.xlu0 %1156
    %1158 = vrot.lane.b32.xlu0 %v1152, 1
    %v1159 = vpop.permute.xlu0 %1158
    %v1160 = vsel %vm346, %v1155, %v1157
    %v1161 = vsel %vm346, %v1157, %v1159
    %v1163 = vsel %vm907, %v1136, 0
    %v1166 = vsel %vm911, %v1160, 0
    %v1169 = vsel %vm911, %v1161, 0
    %1171 = vmatprep.subr.bf16.mxu0 %v1169
    %1172 = vmatpush1.bf16.msra.mxu0 %v1166
    %1173 = vmatprep.subr.bf16.mxu0 0
    %1174 = vmatpush1.bf16.msra.mxu0 0
    %1175 = vmatprep.subr.bf16.mxu0 0
    %1176 = vmatpush1.bf16.msra.mxu0 0
    %1177 = vmatprep.subr.bf16.mxu0 0
    %1178 = vmatpush1.bf16.msra.mxu0 0
    %1179 = vmatprep.subr.bf16.mxu0 0
    %1180 = vmatpush1.bf16.msra.mxu0 0
    %1181 = vmatprep.subr.bf16.mxu0 0
    %1182 = vmatpush1.bf16.msra.mxu0 0
    %1183 = vmatprep.subr.bf16.mxu0 0
    %1184 = vmatpush1.bf16.msra.mxu0 0
    %1185 = vmatprep.subr.bf16.mxu0 0
    %1186 = vmatpush1.bf16.msra.mxu0 0
    %1187 = vmatprep.subr.bf16.mxu0 0
    %1188 = vmatpush1.bf16.msra.mxu0 0
    %1189 = vmatprep.subr.bf16.mxu0 0
    %1190 = vmatpush1.bf16.msra.mxu0 0
    %1191 = vmatprep.subr.bf16.mxu0 0
    %1192 = vmatpush1.bf16.msra.mxu0 0
    %1193 = vmatprep.subr.bf16.mxu0 0
    %1194 = vmatpush1.bf16.msra.mxu0 0
    %1195 = vmatprep.subr.bf16.mxu0 0
    %1196 = vmatpush1.bf16.msra.mxu0 0
    %1197 = vmatprep.subr.bf16.mxu0 0
    %1198 = vmatpush1.bf16.msra.mxu0 0
    %1199 = vmatprep.subr.bf16.mxu0 0
    %1200 = vmatpush1.bf16.msra.mxu0 0
    %1201 = vmatprep.subr.bf16.mxu0 0
    %1202 = vmatpush1.bf16.msra.mxu0 0
    %1203 = vmatprep.mubr.bf16.mxu0 0
    %1204 = vmatmul.mubr.bf16.gmra.mrb[0].mxu0 %v1163
    %v1205 = vpop.f32.mrb[0].mxu0
    %v1206 = vadd.f32 0.0, %v1205
    %v1207 = vpop.f32.mrb[0].mxu0
    %v1208 = vadd.f32 0.0, %v1207
    %v1209 = vpop.f32.mrb[0].mxu0
    %v1210 = vpop.f32.mrb[0].mxu0
    %1211 = vdwg.mxu0
    %v1212 = vld [vmem:[#allocation5] sm:$0xff]
    %v1215 = vcombine.low %v1206, %v1208
    %v1217 = vadd.f32 %v1212, %v1215
    %1218 = vst [vmem:[#allocation5] sm:$0xff] %v1217
    %v1219 = vld [vmem:[#allocation3 + $0x2] sm:$0xf]
    %s1220 = scalar_lea.vmem %s8, 8
    %v1221 = vld [vmem:[%s1220] sm:$0x3]
    %v1224 = vunpack.c.l.s4 1983009808
    %v1225 = vunpack.c.0.s8 %v1224
    %v1226 = vlaneseq
    %v1227 = vshrl.u32 %v1226, 7
    %v1228 = vsub.s32 %v1225, %v1227
    %v1229 = vrot.slane %v1219, %v1228
    %v1230 = vcombine.high %v1229, %v1229
    %v1232 = vsel %vm907, %v1221, 0
    %v1235 = vsel %vm911, %v1229, 0
    %v1238 = vsel %vm911, %v1230, 0
    %1240 = vmatprep.subr.bf16.mxu0 %v1238
    %1241 = vmatpush1.bf16.msra.mxu0 %v1235
    %1242 = vmatprep.subr.bf16.mxu0 0
    %1243 = vmatpush1.bf16.msra.mxu0 0
    %1244 = vmatprep.subr.bf16.mxu0 0
    %1245 = vmatpush1.bf16.msra.mxu0 0
    %1246 = vmatprep.subr.bf16.mxu0 0
    %1247 = vmatpush1.bf16.msra.mxu0 0
    %1248 = vmatprep.subr.bf16.mxu0 0
    %1249 = vmatpush1.bf16.msra.mxu0 0
    %1250 = vmatprep.subr.bf16.mxu0 0
    %1251 = vmatpush1.bf16.msra.mxu0 0
    %1252 = vmatprep.subr.bf16.mxu0 0
    %1253 = vmatpush1.bf16.msra.mxu0 0
    %1254 = vmatprep.subr.bf16.mxu0 0
    %1255 = vmatpush1.bf16.msra.mxu0 0
    %1256 = vmatprep.subr.bf16.mxu0 0
    %1257 = vmatpush1.bf16.msra.mxu0 0
    %1258 = vmatprep.subr.bf16.mxu0 0
    %1259 = vmatpush1.bf16.msra.mxu0 0
    %1260 = vmatprep.subr.bf16.mxu0 0
    %1261 = vmatpush1.bf16.msra.mxu0 0
    %1262 = vmatprep.subr.bf16.mxu0 0
    %1263 = vmatpush1.bf16.msra.mxu0 0
    %1264 = vmatprep.subr.bf16.mxu0 0
    %1265 = vmatpush1.bf16.msra.mxu0 0
    %1266 = vmatprep.subr.bf16.mxu0 0
    %1267 = vmatpush1.bf16.msra.mxu0 0
    %1268 = vmatprep.subr.bf16.mxu0 0
    %1269 = vmatpush1.bf16.msra.mxu0 0
    %1270 = vmatprep.subr.bf16.mxu0 0
    %1271 = vmatpush1.bf16.msra.mxu0 0
    %1272 = vmatprep.mubr.bf16.mxu0 0
    %1273 = vmatmul.mubr.bf16.gmra.mrb[0].mxu0 %v1232
    %v1274 = vpop.f32.mrb[0].mxu0
    %v1275 = vadd.f32 0.0, %v1274
    %v1276 = vpop.f32.mrb[0].mxu0
    %v1277 = vadd.f32 0.0, %v1276
    %v1278 = vpop.f32.mrb[0].mxu0
    %v1279 = vpop.f32.mrb[0].mxu0
    %1280 = vdwg.mxu0
    %v1281 = vld [vmem:[#allocation5] sm:$0xff]
    %v1284 = vcombine.low %v1275, %v1277
    %v1286 = vadd.f32 %v1281, %v1284
    %1287 = vst [vmem:[#allocation5] sm:$0xff] %v1286
    %v1288 = vld [vmem:[#allocation3 + $0x2] sm:$0x3f]
    %s1289 = scalar_lea.vmem %s8, 10
    %v1290 = vld [vmem:[%s1289] sm:$0x3]
    %v1292 = vcombine.high %v1288, %v1288
    %v1294 = vunpack.c.l.s4 1983009808
    %v1295 = vunpack.c.0.s8 %v1294
    %v1296 = vlaneseq
    %v1297 = vshrl.u32 %v1296, 7
    %v1298 = vsub.s32 %v1295, %v1297
    %v1299 = vrot.slane %v1288, %v1298
    %v1301 = vunpack.c.l.s4 1983009808
    %v1302 = vunpack.c.0.s8 %v1301
    %v1303 = vlaneseq
    %v1304 = vshrl.u32 %v1303, 7
    %v1305 = vsub.s32 %v1302, %v1304
    %v1306 = vrot.slane %v1292, %v1305
    %v1307 = vcombine.high %v1299, %v1299
    %1308 = vrot.lane.b32.xlu0 %v1299, 127
    %v1309 = vpop.permute.xlu0 %1308
    %1310 = vrot.lane.b32.xlu0 %v1307, 127
    %v1311 = vpop.permute.xlu0 %1310
    %1312 = vrot.lane.b32.xlu0 %v1306, 127
    %v1313 = vpop.permute.xlu0 %1312
    %v1314 = vsel %vm489, %v1309, %v1311
    %v1315 = vsel %vm489, %v1311, %v1313
    %v1317 = vsel %vm907, %v1290, 0
    %v1320 = vsel %vm911, %v1314, 0
    %v1323 = vsel %vm911, %v1315, 0
    %1325 = vmatprep.subr.bf16.mxu0 %v1323
    %1326 = vmatpush1.bf16.msra.mxu0 %v1320
    %1327 = vmatprep.subr.bf16.mxu0 0
    %1328 = vmatpush1.bf16.msra.mxu0 0
    %1329 = vmatprep.subr.bf16.mxu0 0
    %1330 = vmatpush1.bf16.msra.mxu0 0
    %1331 = vmatprep.subr.bf16.mxu0 0
    %1332 = vmatpush1.bf16.msra.mxu0 0
    %1333 = vmatprep.subr.bf16.mxu0 0
    %1334 = vmatpush1.bf16.msra.mxu0 0
    %1335 = vmatprep.subr.bf16.mxu0 0
    %1336 = vmatpush1.bf16.msra.mxu0 0
    %1337 = vmatprep.subr.bf16.mxu0 0
    %1338 = vmatpush1.bf16.msra.mxu0 0
    %1339 = vmatprep.subr.bf16.mxu0 0
    %1340 = vmatpush1.bf16.msra.mxu0 0
    %1341 = vmatprep.subr.bf16.mxu0 0
    %1342 = vmatpush1.bf16.msra.mxu0 0
    %1343 = vmatprep.subr.bf16.mxu0 0
    %1344 = vmatpush1.bf16.msra.mxu0 0
    %1345 = vmatprep.subr.bf16.mxu0 0
    %1346 = vmatpush1.bf16.msra.mxu0 0
    %1347 = vmatprep.subr.bf16.mxu0 0
    %1348 = vmatpush1.bf16.msra.mxu0 0
    %1349 = vmatprep.subr.bf16.mxu0 0
    %1350 = vmatpush1.bf16.msra.mxu0 0
    %1351 = vmatprep.subr.bf16.mxu0 0
    %1352 = vmatpush1.bf16.msra.mxu0 0
    %1353 = vmatprep.subr.bf16.mxu0 0
    %1354 = vmatpush1.bf16.msra.mxu0 0
    %1355 = vmatprep.subr.bf16.mxu0 0
    %1356 = vmatpush1.bf16.msra.mxu0 0
    %1357 = vmatprep.mubr.bf16.mxu0 0
    %1358 = vmatmul.mubr.bf16.gmra.mrb[0].mxu0 %v1317
    %v1359 = vpop.f32.mrb[0].mxu0
    %v1360 = vadd.f32 0.0, %v1359
    %v1361 = vpop.f32.mrb[0].mxu0
    %v1362 = vadd.f32 0.0, %v1361
    %v1363 = vpop.f32.mrb[0].mxu0
    %v1364 = vpop.f32.mrb[0].mxu0
    %1365 = vdwg.mxu0
    %v1366 = vld [vmem:[#allocation5] sm:$0xff]
    %v1369 = vcombine.low %v1360, %v1362
    %v1371 = vadd.f32 %v1366, %v1369
    %1372 = vst [vmem:[#allocation5] sm:$0xff] %v1371
    %v1373 = vld [vmem:[#allocation3 + $0x2] sm:$0x3f]
    %s1374 = scalar_lea.vmem %s8, 12
    %v1375 = vld [vmem:[%s1374] sm:$0x3]
    %v1377 = vcombine.high %v1373, %v1373
    %v1379 = vunpack.c.l.s4 1983009808
    %v1380 = vunpack.c.0.s8 %v1379
    %v1381 = vlaneseq
    %v1382 = vshrl.u32 %v1381, 7
    %v1383 = vsub.s32 %v1380, %v1382
    %v1384 = vrot.slane %v1373, %v1383
    %v1386 = vunpack.c.l.s4 1983009808
    %v1387 = vunpack.c.0.s8 %v1386
    %v1388 = vlaneseq
    %v1389 = vshrl.u32 %v1388, 7
    %v1390 = vsub.s32 %v1387, %v1389
    %v1391 = vrot.slane %v1377, %v1390
    %v1392 = vcombine.high %v1384, %v1384
    %1393 = vrot.lane.b32.xlu0 %v1384, 126
    %v1394 = vpop.permute.xlu0 %1393
    %1395 = vrot.lane.b32.xlu0 %v1392, 126
    %v1396 = vpop.permute.xlu0 %1395
    %1397 = vrot.lane.b32.xlu0 %v1391, 126
    %v1398 = vpop.permute.xlu0 %1397
    %v1399 = vsel %vm567, %v1394, %v1396
    %v1400 = vsel %vm567, %v1396, %v1398
    %v1402 = vsel %vm907, %v1375, 0
    %v1405 = vsel %vm911, %v1399, 0
    %v1408 = vsel %vm911, %v1400, 0
    %1410 = vmatprep.subr.bf16.mxu0 %v1408
    %1411 = vmatpush1.bf16.msra.mxu0 %v1405
    %1412 = vmatprep.subr.bf16.mxu0 0
    %1413 = vmatpush1.bf16.msra.mxu0 0
    %1414 = vmatprep.subr.bf16.mxu0 0
    %1415 = vmatpush1.bf16.msra.mxu0 0
    %1416 = vmatprep.subr.bf16.mxu0 0
    %1417 = vmatpush1.bf16.msra.mxu0 0
    %1418 = vmatprep.subr.bf16.mxu0 0
    %1419 = vmatpush1.bf16.msra.mxu0 0
    %1420 = vmatprep.subr.bf16.mxu0 0
    %1421 = vmatpush1.bf16.msra.mxu0 0
    %1422 = vmatprep.subr.bf16.mxu0 0
    %1423 = vmatpush1.bf16.msra.mxu0 0
    %1424 = vmatprep.subr.bf16.mxu0 0
    %1425 = vmatpush1.bf16.msra.mxu0 0
    %1426 = vmatprep.subr.bf16.mxu0 0
    %1427 = vmatpush1.bf16.msra.mxu0 0
    %1428 = vmatprep.subr.bf16.mxu0 0
    %1429 = vmatpush1.bf16.msra.mxu0 0
    %1430 = vmatprep.subr.bf16.mxu0 0
    %1431 = vmatpush1.bf16.msra.mxu0 0
    %1432 = vmatprep.subr.bf16.mxu0 0
    %1433 = vmatpush1.bf16.msra.mxu0 0
    %1434 = vmatprep.subr.bf16.mxu0 0
    %1435 = vmatpush1.bf16.msra.mxu0 0
    %1436 = vmatprep.subr.bf16.mxu0 0
    %1437 = vmatpush1.bf16.msra.mxu0 0
    %1438 = vmatprep.subr.bf16.mxu0 0
    %1439 = vmatpush1.bf16.msra.mxu0 0
    %1440 = vmatprep.subr.bf16.mxu0 0
    %1441 = vmatpush1.bf16.msra.mxu0 0
    %1442 = vmatprep.mubr.bf16.mxu0 0
    %1443 = vmatmul.mubr.bf16.gmra.mrb[0].mxu0 %v1402
    %v1444 = vpop.f32.mrb[0].mxu0
    %v1445 = vadd.f32 0.0, %v1444
    %v1446 = vpop.f32.mrb[0].mxu0
    %v1447 = vadd.f32 0.0, %v1446
    %v1448 = vpop.f32.mrb[0].mxu0
    %v1449 = vpop.f32.mrb[0].mxu0
    %1450 = vdwg.mxu0
    %v1451 = vld [vmem:[#allocation5] sm:$0xff]
    %v1454 = vcombine.low %v1445, %v1447
    %v1456 = vadd.f32 %v1451, %v1454
    %1457 = vst [vmem:[#allocation5] sm:$0xff] %v1456
    %v1458 = vld [vmem:[#allocation3 + $0x2] sm:$0x3f]
    %s1459 = scalar_lea.vmem %s8, 14
    %v1460 = vld [vmem:[%s1459] sm:$0x3]
    %v1462 = vcombine.high %v1458, %v1458
    %v1464 = vunpack.c.l.s4 1983009808
    %v1465 = vunpack.c.0.s8 %v1464
    %v1466 = vlaneseq
    %v1467 = vshrl.u32 %v1466, 7
    %v1468 = vsub.s32 %v1465, %v1467
    %v1469 = vrot.slane %v1458, %v1468
    %v1471 = vunpack.c.l.s4 1983009808
    %v1472 = vunpack.c.0.s8 %v1471
    %v1473 = vlaneseq
    %v1474 = vshrl.u32 %v1473, 7
    %v1475 = vsub.s32 %v1472, %v1474
    %v1476 = vrot.slane %v1462, %v1475
    %v1477 = vcombine.high %v1469, %v1469
    %1478 = vrot.lane.b32.xlu0 %v1469, 125
    %v1479 = vpop.permute.xlu0 %1478
    %1480 = vrot.lane.b32.xlu0 %v1477, 125
    %v1481 = vpop.permute.xlu0 %1480
    %1482 = vrot.lane.b32.xlu0 %v1476, 125
    %v1483 = vpop.permute.xlu0 %1482
    %v1484 = vsel %vm645, %v1479, %v1481
    %v1485 = vsel %vm645, %v1481, %v1483
    %v1487 = vsel %vm907, %v1460, 0
    %v1490 = vsel %vm911, %v1484, 0
    %v1493 = vsel %vm911, %v1485, 0
    %1495 = vmatprep.subr.bf16.mxu0 %v1493
    %1496 = vmatpush1.bf16.msra.mxu0 %v1490
    %1497 = vmatprep.subr.bf16.mxu0 0
    %1498 = vmatpush1.bf16.msra.mxu0 0
    %1499 = vmatprep.subr.bf16.mxu0 0
    %1500 = vmatpush1.bf16.msra.mxu0 0
    %1501 = vmatprep.subr.bf16.mxu0 0
    %1502 = vmatpush1.bf16.msra.mxu0 0
    %1503 = vmatprep.subr.bf16.mxu0 0
    %1504 = vmatpush1.bf16.msra.mxu0 0
    %1505 = vmatprep.subr.bf16.mxu0 0
    %1506 = vmatpush1.bf16.msra.mxu0 0
    %1507 = vmatprep.subr.bf16.mxu0 0
    %1508 = vmatpush1.bf16.msra.mxu0 0
    %1509 = vmatprep.subr.bf16.mxu0 0
    %1510 = vmatpush1.bf16.msra.mxu0 0
    %1511 = vmatprep.subr.bf16.mxu0 0
    %1512 = vmatpush1.bf16.msra.mxu0 0
    %1513 = vmatprep.subr.bf16.mxu0 0
    %1514 = vmatpush1.bf16.msra.mxu0 0
    %1515 = vmatprep.subr.bf16.mxu0 0
    %1516 = vmatpush1.bf16.msra.mxu0 0
    %1517 = vmatprep.subr.bf16.mxu0 0
    %1518 = vmatpush1.bf16.msra.mxu0 0
    %1519 = vmatprep.subr.bf16.mxu0 0
    %1520 = vmatpush1.bf16.msra.mxu0 0
    %1521 = vmatprep.subr.bf16.mxu0 0
    %1522 = vmatpush1.bf16.msra.mxu0 0
    %1523 = vmatprep.subr.bf16.mxu0 0
    %1524 = vmatpush1.bf16.msra.mxu0 0
    %1525 = vmatprep.subr.bf16.mxu0 0
    %1526 = vmatpush1.bf16.msra.mxu0 0
    %1527 = vmatprep.mubr.bf16.mxu0 0
    %1528 = vmatmul.mubr.bf16.gmra.mrb[0].mxu0 %v1487
    %v1529 = vpop.f32.mrb[0].mxu0
    %v1530 = vadd.f32 0.0, %v1529
    %v1531 = vpop.f32.mrb[0].mxu0
    %v1532 = vadd.f32 0.0, %v1531
    %v1533 = vpop.f32.mrb[0].mxu0
    %v1534 = vpop.f32.mrb[0].mxu0
    %1535 = vdwg.mxu0
    %v1536 = vld [vmem:[#allocation5] sm:$0xff]
    %v1539 = vcombine.low %v1530, %v1532
    %v1541 = vadd.f32 %v1536, %v1539
    %1542 = vst [vmem:[#allocation5] sm:$0xff] %v1541
    %v1543 = vld [vmem:[#allocation3 + $0x2] sm:$0x3f]
    %s1544 = scalar_lea.vmem %s8, 16
    %v1545 = vld [vmem:[%s1544] sm:$0x3]
    %v1547 = vcombine.high %v1543, %v1543
    %v1549 = vunpack.c.l.s4 1983009808
    %v1550 = vunpack.c.0.s8 %v1549
    %v1551 = vlaneseq
    %v1552 = vshrl.u32 %v1551, 7
    %v1553 = vsub.s32 %v1550, %v1552
    %v1554 = vrot.slane %v1543, %v1553
    %v1556 = vunpack.c.l.s4 1983009808
    %v1557 = vunpack.c.0.s8 %v1556
    %v1558 = vlaneseq
    %v1559 = vshrl.u32 %v1558, 7
    %v1560 = vsub.s32 %v1557, %v1559
    %v1561 = vrot.slane %v1547, %v1560
    %v1562 = vcombine.high %v1554, %v1554
    %1563 = vrot.lane.b32.xlu0 %v1554, 124
    %v1564 = vpop.permute.xlu0 %1563
    %1565 = vrot.lane.b32.xlu0 %v1562, 124
    %v1566 = vpop.permute.xlu0 %1565
    %1567 = vrot.lane.b32.xlu0 %v1561, 124
    %v1568 = vpop.permute.xlu0 %1567
    %v1569 = vsel %vm723, %v1564, %v1566
    %v1570 = vsel %vm723, %v1566, %v1568
    %v1572 = vsel %vm907, %v1545, 0
    %v1575 = vsel %vm911, %v1569, 0
    %v1578 = vsel %vm911, %v1570, 0
    %1580 = vmatprep.subr.bf16.mxu0 %v1578
    %1581 = vmatpush1.bf16.msra.mxu0 %v1575
    %1582 = vmatprep.subr.bf16.mxu0 0
    %1583 = vmatpush1.bf16.msra.mxu0 0
    %1584 = vmatprep.subr.bf16.mxu0 0
    %1585 = vmatpush1.bf16.msra.mxu0 0
    %1586 = vmatprep.subr.bf16.mxu0 0
    %1587 = vmatpush1.bf16.msra.mxu0 0
    %1588 = vmatprep.subr.bf16.mxu0 0
    %1589 = vmatpush1.bf16.msra.mxu0 0
    %1590 = vmatprep.subr.bf16.mxu0 0
    %1591 = vmatpush1.bf16.msra.mxu0 0
    %1592 = vmatprep.subr.bf16.mxu0 0
    %1593 = vmatpush1.bf16.msra.mxu0 0
    %1594 = vmatprep.subr.bf16.mxu0 0
    %1595 = vmatpush1.bf16.msra.mxu0 0
    %1596 = vmatprep.subr.bf16.mxu0 0
    %1597 = vmatpush1.bf16.msra.mxu0 0
    %1598 = vmatprep.subr.bf16.mxu0 0
    %1599 = vmatpush1.bf16.msra.mxu0 0
    %1600 = vmatprep.subr.bf16.mxu0 0
    %1601 = vmatpush1.bf16.msra.mxu0 0
    %1602 = vmatprep.subr.bf16.mxu0 0
    %1603 = vmatpush1.bf16.msra.mxu0 0
    %1604 = vmatprep.subr.bf16.mxu0 0
    %1605 = vmatpush1.bf16.msra.mxu0 0
    %1606 = vmatprep.subr.bf16.mxu0 0
    %1607 = vmatpush1.bf16.msra.mxu0 0
    %1608 = vmatprep.subr.bf16.mxu0 0
    %1609 = vmatpush1.bf16.msra.mxu0 0
    %1610 = vmatprep.subr.bf16.mxu0 0
    %1611 = vmatpush1.bf16.msra.mxu0 0
    %1612 = vmatprep.mubr.bf16.mxu0 0
    %1613 = vmatmul.mubr.bf16.gmra.mrb[0].mxu0 %v1572
    %v1614 = vpop.f32.mrb[0].mxu0
    %v1615 = vadd.f32 0.0, %v1614
    %v1616 = vpop.f32.mrb[0].mxu0
    %v1617 = vadd.f32 0.0, %v1616
    %v1618 = vpop.f32.mrb[0].mxu0
    %v1619 = vpop.f32.mrb[0].mxu0
    %1620 = vdwg.mxu0
    %v1621 = vld [vmem:[#allocation5] sm:$0xff]
    %v1624 = vcombine.low %v1615, %v1617
    %v1626 = vadd.f32 %v1621, %v1624
    %1627 = vst [vmem:[#allocation5] sm:$0xff] %v1626
    %v1628 = vld [vmem:[#allocation5] sm:$0xff]
    %v1629 = vmul.f32 %v1628, %v795
    %v1631 = vcombine.high %v1629, %v1629
    %v1633 = vsel %vm80, %v1629, 0.0
    %v1634 = vsel %vm80, %v1631, 0.0
    %v1635 = vadd.f32 %v1633, %v1634
    %1636 = vadd.xlane.f32.xlu0 %v1635
    %v1637 = vpop.xlane.xlu0 %1636
    %v1638 = vmul.f32 %v1637, 0.027777778
    %v1639 = vmul.f32 %v1628, %v1628
    %v1640 = vmul.f32 %v1639, %v795
    %v1642 = vcombine.high %v1640, %v1640
    %v1644 = vsel %vm80, %v1640, 0.0
    %v1645 = vsel %vm80, %v1642, 0.0
    %v1646 = vadd.f32 %v1644, %v1645
    %1647 = vadd.xlane.f32.xlu0 %v1646
    %v1648 = vpop.xlane.xlu0 %1647
    %v1649 = vmul.f32 %v1648, 0.027777778
    %v1650 = vmul.f32 %v1638, %v1638
    %v1651 = vsub.f32 %v1649, %v1650
    %v1652 = vadd.f32 %v1651, 1e-05
    %v1653 = vrsqrt.pop %v1652
    %v1654 = vld [vmem:[%s9] sm:$0xf]
    %v1655 = vmul.f32 %v1653, %v1654
    %v1658 = vunpack.c.l.s4 839922192
    %v1659 = vunpack.c.0.s8 %v1658
    %v1660 = vlaneseq
    %v1661 = vshrl.u32 %v1660, 7
    %v1662 = vsub.s32 %v1659, %v1661
    %v1663 = vrot.slane %v1638, %v1662
    %v1665 = vsub.f32 %v1628, %v1663
    %1667 = vset.pattern.permute.xlu0 0
    %1668 = vperm.xlu0 %1667, %v1655
    %v1669 = vpop.permute.xlu0 %1668
    %v1671 = vunpack.c.l.s4 839922192
    %v1672 = vunpack.c.0.s8 %v1671
    %v1673 = vlaneseq
    %v1674 = vshrl.u32 %v1673, 7
    %v1675 = vsub.s32 %v1672, %v1674
    %v1676 = vrot.slane %v1669, %v1675
    %v1678 = vmul.f32 %v1665, %v1676
    %v1679 = vld [vmem:[%s10] sm:$0xf]
    %1681 = vset.pattern.permute.xlu0 0
    %1682 = vperm.xlu0 %1681, %v1679
    %v1683 = vpop.permute.xlu0 %1682
    %v1685 = vunpack.c.l.s4 839922192
    %v1686 = vunpack.c.0.s8 %v1685
    %v1687 = vlaneseq
    %v1688 = vshrl.u32 %v1687, 7
    %v1689 = vsub.s32 %v1686, %v1688
    %v1690 = vrot.slane %v1683, %v1689
    %v1692 = vadd.f32 %v1678, %v1690
    %v1693 = vmax.f32 %v1692, 0.0
    %1694 = vst [vmem:[#allocation5] sm:$0xff] %v1693
    // Predicated region
    $region46: #{tpu_custom_call.1} parent=1 // pred_check
      _
    $region47: #{tpu_custom_call.1} parent=1 // pred_check_branch
      %1696 = sbr.rel (0) target = $region49
    $region48: #{tpu_custom_call.1} parent=1 // pred_region
      %s1698 = ssub.s32 128, 128
      %1699 = vsyncadd [#allocation6], %s1698
      %s1701 = sshll.u32 [#allocation5], 4
      %s1702 = int_to_ptr.vmem [resolvable:$true] %s1701
      %1704 = dma.vmem_to_hbm [thread:$0]  %s1702, 128, %s11, [#allocation6]
    $region49: #{tpu_custom_call.1} parent=1 // pred_fallthru
      _
    // Predicated region
    $region50: #{tpu_custom_call.1} parent=1 // pred_check
      _
    $region51: #{tpu_custom_call.1} parent=1 // pred_check_branch
      %1706 = sbr.rel (0) target = $region53
    $region52: #{tpu_custom_call.1} parent=1 // pred_region
      %s1708 = ssub.s32 256, 256
      %1709 = vsyncadd [#allocation8], %s1708
      %s1711 = sshll.u32 [#allocation7], 4
      %s1712 = int_to_ptr.vmem [resolvable:$true] %s1711
      %1714 = dma.vmem_to_hbm [thread:$0]  %s1712, 256, %s12, [#allocation8]
    $region53: #{tpu_custom_call.1} parent=1 // pred_fallthru
      _
    // Predicated region
    $region54: #{tpu_custom_call.1} parent=1 // pred_check
      _
    $region55: #{tpu_custom_call.1} parent=1 // pred_check_branch
      %1716 = sbr.rel (0) target = $region57
    $region56: #{tpu_custom_call.1} parent=1 // pred_region
      %1717 = dma.done [#allocation6], 128
    $region57: #{tpu_custom_call.1} parent=1 // pred_fallthru
      _
    // Predicated region
    $region58: #{tpu_custom_call.1} parent=1 // pred_check
      _
    $region59: #{tpu_custom_call.1} parent=1 // pred_check_branch
      %1719 = sbr.rel (0) target = $region61
    $region60: #{tpu_custom_call.1} parent=1 // pred_region
      %1720 = dma.done [#allocation8], 256
    $region61: #{tpu_custom_call.1} parent=1 // pred_fallthru
      _
    %1721 = vsyncpa [#allocation6], 1
    %1722 = vsyncpa [#allocation8], 1

</llo_original>
